<compile_context>
chip_gen: v6e
topology: v6e:2x2x1
jax: 0.10.0
libtpu: 0.0.40
codegen_flags: <defaults>
</compile_context>

<pallas_src>
import functools
import math

import jax
import jax.numpy as jnp
from jax import lax
from jax.experimental import pallas as pl
from jax.experimental.pallas import tpu as pltpu

H = W = 16                    # spatial size
HW = H * W                    # 256 lanes per image -> lane axis
C_IN, C_MID, C_OUT = 3, 8, 1
K = 3                         # conv kernel size
KK = K * K                    # 9 taps
K1 = KK * C_IN + 1            # 28 = conv1 contraction (27 taps*c_in + bias ones-row)


def diff_cnn_kernel(x_ref, m_ref, w1_ref, w2_ref, b2_ref, o_ref, p_scr, h_scr):
    # x_ref : (C_IN, nl)   input, lane q = img*256 + y*16 + x
    # m_ref : (KK, sl)     per-tap edge-validity masks (resident, repeats / 256 lanes)
    # w1_ref: (C_MID, K1)  conv1 weights, bias folded into last column
    # w2_ref: (C_MID, KK)  conv2 weights, [channel, tap]
    # b2_ref: (1,) SMEM    conv2 bias scalar
    # o_ref : (1, nl)      sigmoid output (lane-dense)
    # p_scr : (K1, sl)     VMEM im2col strip scratch
    # h_scr : (C_MID, sl)  VMEM hidden-activation strip scratch
    nl = x_ref.shape[1]
    sl = p_scr.shape[1]
    n_strips = nl // sl            # static

    w1 = w1_ref[...]               # (8, 28)  resident, tiny
    w2 = w2_ref[...]               # (8, 9)
    b2 = b2_ref[0]

    # bias ones-row of the im2col block is constant across strips/steps
    p_scr[KK * C_IN:K1, :] = jnp.ones((1, sl), jnp.float32)

    def strip(s, carry):
        off = pl.multiple_of(s * sl, sl)

        # ---- conv1 im2col on-chip: 9 lane-rolls of the (3, sl) input strip.
        # Rolls wrap only at strip edges, and every wrapped / cross-image lane
        # violates the y/x bounds, so the per-tap mask zeroes it (= padding).
        xs = x_ref[:, pl.ds(off, sl)]                       # (3, sl)
        for k in range(KK):
            dy, dx = k // K - 1, k % K - 1
            shift = dy * W + dx
            tap = xs if shift == 0 else pltpu.roll(xs, (-shift) % sl, 1)
            p_scr[k * C_IN:(k + 1) * C_IN, :] = tap * m_ref[k:k + 1, :]

        # ---- conv1 + bias + ReLU: single (8,28)@(28,sl) MXU matmul
        h_scr[...] = jnp.maximum(
            jnp.dot(w1, p_scr[...], preferred_element_type=jnp.float32), 0.0)

        # ---- conv2: per tap, roll hid (XLU), VPU multiply + cross-sublane
        # reduce to (1, sl), then mask the per-tap contribution (post-dot mask
        # is exact since hid is finite).
        acc = jnp.zeros((1, sl), jnp.float32)
        for k in range(KK):
            dy, dx = k // K - 1, k % K - 1
            shift = dy * W + dx
            hid = h_scr[...]                                # (8, sl)
            tap = hid if shift == 0 else pltpu.roll(hid, (-shift) % sl, 1)
            contrib = jnp.sum(tap * w2[:, k:k + 1], axis=0, keepdims=True)
            acc = acc + m_ref[k:k + 1, :] * contrib

        o_ref[:, pl.ds(off, sl)] = jax.nn.sigmoid(acc + b2)
        return carry

    lax.fori_loop(0, n_strips, strip, 0)


@functools.partial(jax.jit, static_argnames=("batch_tile",))
def simple_diff_cnn(x_nchw, w1, b1, w2, b2, *, batch_tile=32):
    """x_nchw: (N, 3, 16, 16) f32. w1: (8,3,3,3), b1: (8,), w2: (1,8,3,3), b2: (1,)."""
    n = x_nchw.shape[0]
    # cap tb so the grid has >= 2 steps whenever N >= 2 (both v7x TensorCores busy)
    tb = max(1, min(batch_tile, pl.cdiv(n, 2)))
    n_pad = pl.cdiv(n, tb) * tb

    x = x_nchw.astype(jnp.float32)
    if n_pad != n:
        x = jnp.pad(x, ((0, n_pad - n), (0, 0), (0, 0), (0, 0)))

    # lane-dense input: channels on sublanes, (image, y, x) on lanes
    x_flat = jnp.transpose(x, (1, 0, 2, 3)).reshape(C_IN, n_pad * HW)

    nl = tb * HW                              # lanes per grid step
    sl = HW * math.gcd(tb, 4)                 # inner strip: whole images, <=1024 lanes

    # edge-validity masks (one (1, sl) row per tap), shared by conv1 im2col & conv2
    q = jnp.arange(HW)
    yy, xx = q // W, q % W
    rows = []
    for k in range(KK):
        dy, dx = k // K - 1, k % K - 1
        rows.append((yy + dy >= 0) & (yy + dy < H) & (xx + dx >= 0) & (xx + dx < W))
    mask = jnp.stack(rows, axis=0).astype(jnp.float32)        # (9, 256)
    mask = jnp.tile(mask, (1, sl // HW))                      # (9, sl)

    # conv1 weights OIHW -> (8, 27), column = tap*3 + c_in; bias as extra column
    w1f = jnp.transpose(w1, (0, 2, 3, 1)).reshape(C_MID, KK * C_IN)
    w1aug = jnp.concatenate([w1f, b1.reshape(C_MID, 1)], axis=1).astype(jnp.float32)
    # conv2 weights (1,8,3,3) -> (8, 9): row = channel, col = ky*3 + kx
    w2ck = w2.reshape(C_MID, KK).astype(jnp.float32)
    b2r = b2.reshape(1).astype(jnp.float32)

    out_flat = pl.pallas_call(
        diff_cnn_kernel,
        out_shape=jax.ShapeDtypeStruct((1, n_pad * HW), jnp.float32),
        grid=(n_pad // tb,),
        in_specs=[
            pl.BlockSpec((C_IN, nl), lambda i: (0, i)),           # lane-dense x block
            pl.BlockSpec((KK, sl), lambda i: (0, 0)),             # edge masks (resident)
            pl.BlockSpec((C_MID, K1), lambda i: (0, 0)),          # conv1 W+b (resident)
            pl.BlockSpec((C_MID, KK), lambda i: (0, 0)),          # conv2 W (resident)
            pl.BlockSpec(memory_space=pltpu.MemorySpace.SMEM),    # conv2 bias scalar
        ],
        out_specs=pl.BlockSpec((1, nl), lambda i: (0, i)),
        scratch_shapes=[
            pltpu.VMEM((K1, sl), jnp.float32),                    # im2col strip
            pltpu.VMEM((C_MID, sl), jnp.float32),                 # hidden strip
        ],
        compiler_params=pltpu.CompilerParams(
            dimension_semantics=("parallel",),                    # batch axis
        ),
    )(x_flat, mask, w1aug, w2ck, b2r)

    # lanes ordered (image, y, x): back to NCHW, drop batch padding
    return out_flat.reshape(n_pad, C_OUT, H, W)[:n]


def _ref_forward(x, w1, b1, w2, b2):
    """Pure-JAX reference (same math as the PyTorch module)."""
    dn = ("NCHW", "OIHW", "NCHW")
    y = lax.conv_general_dilated(x, w1, (1, 1), ((1, 1), (1, 1)),
                                 dimension_numbers=dn) + b1[None, :, None, None]
    y = jnp.maximum(y, 0.0)
    y = lax.conv_general_dilated(y, w2, (1, 1), ((1, 1), (1, 1)),
                                 dimension_numbers=dn) + b2[None, :, None, None]
    return jax.nn.sigmoid(y)


if __name__ == "__main__":
    key = jax.random.PRNGKey(0)
    kx, k1, k2, k3, k4 = jax.random.split(key, 5)

    n = 8
    x = jax.random.normal(kx, (n, C_IN, H, W), jnp.float32)
    w1 = jax.random.normal(k1, (C_MID, C_IN, K, K), jnp.float32) * 0.1
    b1 = jax.random.normal(k2, (C_MID,), jnp.float32) * 0.1
    w2 = jax.random.normal(k3, (C_OUT, C_MID, K, K), jnp.float32) * 0.1
    b2 = jax.random.normal(k4, (C_OUT,), jnp.float32) * 0.1

    out = jax.block_until_ready(simple_diff_cnn(x, w1, b1, w2, b2))
    ref = jax.block_until_ready(_ref_forward(x, w1, b1, w2, b2))

    assert out.shape == (n, C_OUT, H, W), out.shape
    err = float(jnp.max(jnp.abs(out - ref)))
    assert err < 1e-4, err
    print("KERNEL_OK")
</pallas_src>

<mosaic_0001>
module attributes {stable_mosaic.version = 11 : i64} {
  func.func @diff_cnn_kernel(%arg0: i32, %arg1: memref<3x1024xf32, #tpu.memory_space<vmem>>, %arg2: memref<9x1024xf32, #tpu.memory_space<vmem>>, %arg3: memref<8x28xf32, #tpu.memory_space<vmem>>, %arg4: memref<8x9xf32, #tpu.memory_space<vmem>>, %arg5: memref<1xf32, #tpu.memory_space<smem>>, %arg6: memref<1x1024xf32, #tpu.memory_space<vmem>>, %arg7: memref<28x1024xf32, #tpu.memory_space<vmem>>, %arg8: memref<8x1024xf32, #tpu.memory_space<vmem>>) attributes {dimension_semantics = [#tpu.dimension_semantics<parallel>], iteration_bounds = array<i64: 2>, scalar_prefetch = 0 : i64, scratch_operands = 2 : i64, tpu.core_type = #tpu.core_type<tc>, window_params = [{transform_indices = @transform_0, window_bounds = array<i64: 3, 1024>}, {pipeline_mode = #tpu.pipeline_mode<synchronous>, transform_indices = @transform_1, window_bounds = array<i64: 9, 1024>}, {pipeline_mode = #tpu.pipeline_mode<synchronous>, transform_indices = @transform_2, window_bounds = array<i64: 8, 28>}, {pipeline_mode = #tpu.pipeline_mode<synchronous>, transform_indices = @transform_3, window_bounds = array<i64: 8, 9>}, {transform_indices = @transform_4, window_bounds = array<i64: 1>}, {transform_indices = @transform_5, window_bounds = array<i64: 1, 1024>}]} {
    %c0 = arith.constant 0 : index
    %c0_0 = arith.constant 0 : index
    %0 = vector.load %arg3[%c0, %c0_0] : memref<8x28xf32, #tpu.memory_space<vmem>>, vector<8x28xf32>
    %c0_1 = arith.constant 0 : index
    %c0_2 = arith.constant 0 : index
    %1 = vector.load %arg4[%c0_1, %c0_2] : memref<8x9xf32, #tpu.memory_space<vmem>>, vector<8x9xf32>
    %c0_3 = arith.constant 0 : index
    %2 = memref.load %arg5[%c0_3] : memref<1xf32, #tpu.memory_space<smem>>
    %cst = arith.constant 1.000000e+00 : f32
    %3 = vector.broadcast %cst : f32 to vector<1x1024xf32>
    %c27 = arith.constant 27 : index
    %c0_4 = arith.constant 0 : index
    %4 = vector.load %arg7[%c27, %c0_4] : memref<28x1024xf32, #tpu.memory_space<vmem>>, vector<1x1024xf32>
    tpu.vector_store %arg7[%c27, %c0_4], %3 {strides = array<i32>} : memref<28x1024xf32, #tpu.memory_space<vmem>>, vector<1x1024xf32>,
    %c0_i32 = arith.constant 0 : i32
    %c1024_i32 = arith.constant 1024 : i32
    %5 = arith.muli %c0_i32, %c1024_i32 : i32
    %6 = tpu.assume_multiple %5, 1024 : i32
    %c0_5 = arith.constant 0 : index
    %7 = arith.index_cast %6 : i32 to index
    %8 = vector.load %arg1[%c0_5, %7] : memref<3x1024xf32, #tpu.memory_space<vmem>>, vector<3x1024xf32>
    %c17_i32 = arith.constant 17 : i32
    %9 = tpu.dynamic_rotate %8 by %c17_i32 dim 1 : vector<3x1024xf32>, i32 -> vector<3x1024xf32>
    %c0_6 = arith.constant 0 : index
    %c0_7 = arith.constant 0 : index
    %10 = vector.load %arg2[%c0_6, %c0_7] : memref<9x1024xf32, #tpu.memory_space<vmem>>, vector<1x1024xf32>
    %11 = vector.broadcast %10 : vector<1x1024xf32> to vector<3x1024xf32>
    %12 = arith.mulf %9, %11 : vector<3x1024xf32>
    %c0_8 = arith.constant 0 : index
    %c0_9 = arith.constant 0 : index
    %13 = vector.load %arg7[%c0_8, %c0_9] : memref<28x1024xf32, #tpu.memory_space<vmem>>, vector<3x1024xf32>
    tpu.vector_store %arg7[%c0_8, %c0_9], %12 {strides = array<i32>} : memref<28x1024xf32, #tpu.memory_space<vmem>>, vector<3x1024xf32>,
    %c16_i32 = arith.constant 16 : i32
    %14 = tpu.dynamic_rotate %8 by %c16_i32 dim 1 : vector<3x1024xf32>, i32 -> vector<3x1024xf32>
    %c1 = arith.constant 1 : index
    %c0_10 = arith.constant 0 : index
    %15 = vector.load %arg2[%c1, %c0_10] : memref<9x1024xf32, #tpu.memory_space<vmem>>, vector<1x1024xf32>
    %16 = vector.broadcast %15 : vector<1x1024xf32> to vector<3x1024xf32>
    %17 = arith.mulf %14, %16 : vector<3x1024xf32>
    %c3 = arith.constant 3 : index
    %c0_11 = arith.constant 0 : index
    %18 = vector.load %arg7[%c3, %c0_11] : memref<28x1024xf32, #tpu.memory_space<vmem>>, vector<3x1024xf32>
    tpu.vector_store %arg7[%c3, %c0_11], %17 {strides = array<i32>} : memref<28x1024xf32, #tpu.memory_space<vmem>>, vector<3x1024xf32>,
    %c15_i32 = arith.constant 15 : i32
    %19 = tpu.dynamic_rotate %8 by %c15_i32 dim 1 : vector<3x1024xf32>, i32 -> vector<3x1024xf32>
    %c2 = arith.constant 2 : index
    %c0_12 = arith.constant 0 : index
    %20 = vector.load %arg2[%c2, %c0_12] : memref<9x1024xf32, #tpu.memory_space<vmem>>, vector<1x1024xf32>
    %21 = vector.broadcast %20 : vector<1x1024xf32> to vector<3x1024xf32>
    %22 = arith.mulf %19, %21 : vector<3x1024xf32>
    %c6 = arith.constant 6 : index
    %c0_13 = arith.constant 0 : index
    %23 = vector.load %arg7[%c6, %c0_13] : memref<28x1024xf32, #tpu.memory_space<vmem>>, vector<3x1024xf32>
    tpu.vector_store %arg7[%c6, %c0_13], %22 {strides = array<i32>} : memref<28x1024xf32, #tpu.memory_space<vmem>>, vector<3x1024xf32>,
    %c1_i32 = arith.constant 1 : i32
    %24 = tpu.dynamic_rotate %8 by %c1_i32 dim 1 : vector<3x1024xf32>, i32 -> vector<3x1024xf32>
    %c3_14 = arith.constant 3 : index
    %c0_15 = arith.constant 0 : index
    %25 = vector.load %arg2[%c3_14, %c0_15] : memref<9x1024xf32, #tpu.memory_space<vmem>>, vector<1x1024xf32>
    %26 = vector.broadcast %25 : vector<1x1024xf32> to vector<3x1024xf32>
    %27 = arith.mulf %24, %26 : vector<3x1024xf32>
    %c9 = arith.constant 9 : index
    %c0_16 = arith.constant 0 : index
    %28 = vector.load %arg7[%c9, %c0_16] : memref<28x1024xf32, #tpu.memory_space<vmem>>, vector<3x1024xf32>
    tpu.vector_store %arg7[%c9, %c0_16], %27 {strides = array<i32>} : memref<28x1024xf32, #tpu.memory_space<vmem>>, vector<3x1024xf32>,
    %c4 = arith.constant 4 : index
    %c0_17 = arith.constant 0 : index
    %29 = vector.load %arg2[%c4, %c0_17] : memref<9x1024xf32, #tpu.memory_space<vmem>>, vector<1x1024xf32>
    %30 = vector.broadcast %29 : vector<1x1024xf32> to vector<3x1024xf32>
    %31 = arith.mulf %8, %30 : vector<3x1024xf32>
    %c12 = arith.constant 12 : index
    %c0_18 = arith.constant 0 : index
    %32 = vector.load %arg7[%c12, %c0_18] : memref<28x1024xf32, #tpu.memory_space<vmem>>, vector<3x1024xf32>
    tpu.vector_store %arg7[%c12, %c0_18], %31 {strides = array<i32>} : memref<28x1024xf32, #tpu.memory_space<vmem>>, vector<3x1024xf32>,
    %c1023_i32 = arith.constant 1023 : i32
    %33 = tpu.dynamic_rotate %8 by %c1023_i32 dim 1 : vector<3x1024xf32>, i32 -> vector<3x1024xf32>
    %c5 = arith.constant 5 : index
    %c0_19 = arith.constant 0 : index
    %34 = vector.load %arg2[%c5, %c0_19] : memref<9x1024xf32, #tpu.memory_space<vmem>>, vector<1x1024xf32>
    %35 = vector.broadcast %34 : vector<1x1024xf32> to vector<3x1024xf32>
    %36 = arith.mulf %33, %35 : vector<3x1024xf32>
    %c15 = arith.constant 15 : index
    %c0_20 = arith.constant 0 : index
    %37 = vector.load %arg7[%c15, %c0_20] : memref<28x1024xf32, #tpu.memory_space<vmem>>, vector<3x1024xf32>
    tpu.vector_store %arg7[%c15, %c0_20], %36 {strides = array<i32>} : memref<28x1024xf32, #tpu.memory_space<vmem>>, vector<3x1024xf32>,
    %c1009_i32 = arith.constant 1009 : i32
    %38 = tpu.dynamic_rotate %8 by %c1009_i32 dim 1 : vector<3x1024xf32>, i32 -> vector<3x1024xf32>
    %c6_21 = arith.constant 6 : index
    %c0_22 = arith.constant 0 : index
    %39 = vector.load %arg2[%c6_21, %c0_22] : memref<9x1024xf32, #tpu.memory_space<vmem>>, vector<1x1024xf32>
    %40 = vector.broadcast %39 : vector<1x1024xf32> to vector<3x1024xf32>
    %41 = arith.mulf %38, %40 : vector<3x1024xf32>
    %c18 = arith.constant 18 : index
    %c0_23 = arith.constant 0 : index
    %42 = vector.load %arg7[%c18, %c0_23] : memref<28x1024xf32, #tpu.memory_space<vmem>>, vector<3x1024xf32>
    tpu.vector_store %arg7[%c18, %c0_23], %41 {strides = array<i32>} : memref<28x1024xf32, #tpu.memory_space<vmem>>, vector<3x1024xf32>,
    %c1008_i32 = arith.constant 1008 : i32
    %43 = tpu.dynamic_rotate %8 by %c1008_i32 dim 1 : vector<3x1024xf32>, i32 -> vector<3x1024xf32>
    %c7 = arith.constant 7 : index
    %c0_24 = arith.constant 0 : index
    %44 = vector.load %arg2[%c7, %c0_24] : memref<9x1024xf32, #tpu.memory_space<vmem>>, vector<1x1024xf32>
    %45 = vector.broadcast %44 : vector<1x1024xf32> to vector<3x1024xf32>
    %46 = arith.mulf %43, %45 : vector<3x1024xf32>
    %c21 = arith.constant 21 : index
    %c0_25 = arith.constant 0 : index
    %47 = vector.load %arg7[%c21, %c0_25] : memref<28x1024xf32, #tpu.memory_space<vmem>>, vector<3x1024xf32>
    tpu.vector_store %arg7[%c21, %c0_25], %46 {strides = array<i32>} : memref<28x1024xf32, #tpu.memory_space<vmem>>, vector<3x1024xf32>,
    %c1007_i32 = arith.constant 1007 : i32
    %48 = tpu.dynamic_rotate %8 by %c1007_i32 dim 1 : vector<3x1024xf32>, i32 -> vector<3x1024xf32>
    %c8 = arith.constant 8 : index
    %c0_26 = arith.constant 0 : index
    %49 = vector.load %arg2[%c8, %c0_26] : memref<9x1024xf32, #tpu.memory_space<vmem>>, vector<1x1024xf32>
    %50 = vector.broadcast %49 : vector<1x1024xf32> to vector<3x1024xf32>
    %51 = arith.mulf %48, %50 : vector<3x1024xf32>
    %c24 = arith.constant 24 : index
    %c0_27 = arith.constant 0 : index
    %52 = vector.load %arg7[%c24, %c0_27] : memref<28x1024xf32, #tpu.memory_space<vmem>>, vector<3x1024xf32>
    tpu.vector_store %arg7[%c24, %c0_27], %51 {strides = array<i32>} : memref<28x1024xf32, #tpu.memory_space<vmem>>, vector<3x1024xf32>,
    %c0_28 = arith.constant 0 : index
    %c0_29 = arith.constant 0 : index
    %53 = vector.load %arg7[%c0_28, %c0_29] : memref<28x1024xf32, #tpu.memory_space<vmem>>, vector<28x1024xf32>
    %cst_30 = arith.constant dense<0.000000e+00> : vector<8x1024xf32>
    %54 = tpu.matmul %0, %53, %cst_30 {dimension_numbers = #tpu.dot_dimension_numbers<[1], [0], [0], [1], [0, 0, 1, 1], [], []>} : vector<8x28xf32>, vector<28x1024xf32>, vector<8x1024xf32> -> vector<8x1024xf32>
    %cst_31 = arith.constant 0.000000e+00 : f32
    %55 = vector.broadcast %cst_31 : f32 to vector<8x1024xf32>
    %56 = arith.maximumf %54, %55 : vector<8x1024xf32>
    %c0_32 = arith.constant 0 : index
    %c0_33 = arith.constant 0 : index
    %57 = vector.load %arg8[%c0_32, %c0_33] : memref<8x1024xf32, #tpu.memory_space<vmem>>, vector<8x1024xf32>
    tpu.vector_store %arg8[%c0_32, %c0_33], %56 {strides = array<i32>} : memref<8x1024xf32, #tpu.memory_space<vmem>>, vector<8x1024xf32>,
    %cst_34 = arith.constant 0.000000e+00 : f32
    %58 = vector.broadcast %cst_34 : f32 to vector<1x1024xf32>
    %c0_35 = arith.constant 0 : index
    %c0_36 = arith.constant 0 : index
    %59 = vector.load %arg8[%c0_35, %c0_36] : memref<8x1024xf32, #tpu.memory_space<vmem>>, vector<8x1024xf32>
    %c17_i32_37 = arith.constant 17 : i32
    %60 = tpu.dynamic_rotate %59 by %c17_i32_37 dim 1 : vector<8x1024xf32>, i32 -> vector<8x1024xf32>
    %61 = vector.extract_strided_slice %1 {offsets = [0, 0], sizes = [8, 1], strides = [1, 1]} : vector<8x9xf32> to vector<8x1xf32>
    %62 = vector.broadcast %61 : vector<8x1xf32> to vector<8x1024xf32>
    %63 = arith.mulf %60, %62 : vector<8x1024xf32>
    %cst_38 = arith.constant dense<0.000000e+00> : vector<1024xf32>
    %64 = vector.multi_reduction <add>, %63, %cst_38 [0] : vector<8x1024xf32> to vector<1024xf32>
    %65 = vector.shape_cast %64 : vector<1024xf32> to vector<1x1024xf32>
    %c0_39 = arith.constant 0 : index
    %c0_40 = arith.constant 0 : index
    %66 = vector.load %arg2[%c0_39, %c0_40] : memref<9x1024xf32, #tpu.memory_space<vmem>>, vector<1x1024xf32>
    %67 = arith.mulf %66, %65 : vector<1x1024xf32>
    %68 = arith.addf %58, %67 : vector<1x1024xf32>
    %c0_41 = arith.constant 0 : index
    %c0_42 = arith.constant 0 : index
    %69 = vector.load %arg8[%c0_41, %c0_42] : memref<8x1024xf32, #tpu.memory_space<vmem>>, vector<8x1024xf32>
    %c16_i32_43 = arith.constant 16 : i32
    %70 = tpu.dynamic_rotate %69 by %c16_i32_43 dim 1 : vector<8x1024xf32>, i32 -> vector<8x1024xf32>
    %71 = vector.extract_strided_slice %1 {offsets = [0, 1], sizes = [8, 1], strides = [1, 1]} : vector<8x9xf32> to vector<8x1xf32>
    %72 = vector.broadcast %71 : vector<8x1xf32> to vector<8x1024xf32>
    %73 = arith.mulf %70, %72 : vector<8x1024xf32>
    %cst_44 = arith.constant dense<0.000000e+00> : vector<1024xf32>
    %74 = vector.multi_reduction <add>, %73, %cst_44 [0] : vector<8x1024xf32> to vector<1024xf32>
    %75 = vector.shape_cast %74 : vector<1024xf32> to vector<1x1024xf32>
    %c1_45 = arith.constant 1 : index
    %c0_46 = arith.constant 0 : index
    %76 = vector.load %arg2[%c1_45, %c0_46] : memref<9x1024xf32, #tpu.memory_space<vmem>>, vector<1x1024xf32>
    %77 = arith.mulf %76, %75 : vector<1x1024xf32>
    %78 = arith.addf %68, %77 : vector<1x1024xf32>
    %c0_47 = arith.constant 0 : index
    %c0_48 = arith.constant 0 : index
    %79 = vector.load %arg8[%c0_47, %c0_48] : memref<8x1024xf32, #tpu.memory_space<vmem>>, vector<8x1024xf32>
    %c15_i32_49 = arith.constant 15 : i32
    %80 = tpu.dynamic_rotate %79 by %c15_i32_49 dim 1 : vector<8x1024xf32>, i32 -> vector<8x1024xf32>
    %81 = vector.extract_strided_slice %1 {offsets = [0, 2], sizes = [8, 1], strides = [1, 1]} : vector<8x9xf32> to vector<8x1xf32>
    %82 = vector.broadcast %81 : vector<8x1xf32> to vector<8x1024xf32>
    %83 = arith.mulf %80, %82 : vector<8x1024xf32>
    %cst_50 = arith.constant dense<0.000000e+00> : vector<1024xf32>
    %84 = vector.multi_reduction <add>, %83, %cst_50 [0] : vector<8x1024xf32> to vector<1024xf32>
    %85 = vector.shape_cast %84 : vector<1024xf32> to vector<1x1024xf32>
    %c2_51 = arith.constant 2 : index
    %c0_52 = arith.constant 0 : index
    %86 = vector.load %arg2[%c2_51, %c0_52] : memref<9x1024xf32, #tpu.memory_space<vmem>>, vector<1x1024xf32>
    %87 = arith.mulf %86, %85 : vector<1x1024xf32>
    %88 = arith.addf %78, %87 : vector<1x1024xf32>
    %c0_53 = arith.constant 0 : index
    %c0_54 = arith.constant 0 : index
    %89 = vector.load %arg8[%c0_53, %c0_54] : memref<8x1024xf32, #tpu.memory_space<vmem>>, vector<8x1024xf32>
    %c1_i32_55 = arith.constant 1 : i32
    %90 = tpu.dynamic_rotate %89 by %c1_i32_55 dim 1 : vector<8x1024xf32>, i32 -> vector<8x1024xf32>
    %91 = vector.extract_strided_slice %1 {offsets = [0, 3], sizes = [8, 1], strides = [1, 1]} : vector<8x9xf32> to vector<8x1xf32>
    %92 = vector.broadcast %91 : vector<8x1xf32> to vector<8x1024xf32>
    %93 = arith.mulf %90, %92 : vector<8x1024xf32>
    %cst_56 = arith.constant dense<0.000000e+00> : vector<1024xf32>
    %94 = vector.multi_reduction <add>, %93, %cst_56 [0] : vector<8x1024xf32> to vector<1024xf32>
    %95 = vector.shape_cast %94 : vector<1024xf32> to vector<1x1024xf32>
    %c3_57 = arith.constant 3 : index
    %c0_58 = arith.constant 0 : index
    %96 = vector.load %arg2[%c3_57, %c0_58] : memref<9x1024xf32, #tpu.memory_space<vmem>>, vector<1x1024xf32>
    %97 = arith.mulf %96, %95 : vector<1x1024xf32>
    %98 = arith.addf %88, %97 : vector<1x1024xf32>
    %c0_59 = arith.constant 0 : index
    %c0_60 = arith.constant 0 : index
    %99 = vector.load %arg8[%c0_59, %c0_60] : memref<8x1024xf32, #tpu.memory_space<vmem>>, vector<8x1024xf32>
    %100 = vector.extract_strided_slice %1 {offsets = [0, 4], sizes = [8, 1], strides = [1, 1]} : vector<8x9xf32> to vector<8x1xf32>
    %101 = vector.broadcast %100 : vector<8x1xf32> to vector<8x1024xf32>
    %102 = arith.mulf %99, %101 : vector<8x1024xf32>
    %cst_61 = arith.constant dense<0.000000e+00> : vector<1024xf32>
    %103 = vector.multi_reduction <add>, %102, %cst_61 [0] : vector<8x1024xf32> to vector<1024xf32>
    %104 = vector.shape_cast %103 : vector<1024xf32> to vector<1x1024xf32>
    %c4_62 = arith.constant 4 : index
    %c0_63 = arith.constant 0 : index
    %105 = vector.load %arg2[%c4_62, %c0_63] : memref<9x1024xf32, #tpu.memory_space<vmem>>, vector<1x1024xf32>
    %106 = arith.mulf %105, %104 : vector<1x1024xf32>
    %107 = arith.addf %98, %106 : vector<1x1024xf32>
    %c0_64 = arith.constant 0 : index
    %c0_65 = arith.constant 0 : index
    %108 = vector.load %arg8[%c0_64, %c0_65] : memref<8x1024xf32, #tpu.memory_space<vmem>>, vector<8x1024xf32>
    %c1023_i32_66 = arith.constant 1023 : i32
    %109 = tpu.dynamic_rotate %108 by %c1023_i32_66 dim 1 : vector<8x1024xf32>, i32 -> vector<8x1024xf32>
    %110 = vector.extract_strided_slice %1 {offsets = [0, 5], sizes = [8, 1], strides = [1, 1]} : vector<8x9xf32> to vector<8x1xf32>
    %111 = vector.broadcast %110 : vector<8x1xf32> to vector<8x1024xf32>
    %112 = arith.mulf %109, %111 : vector<8x1024xf32>
    %cst_67 = arith.constant dense<0.000000e+00> : vector<1024xf32>
    %113 = vector.multi_reduction <add>, %112, %cst_67 [0] : vector<8x1024xf32> to vector<1024xf32>
    %114 = vector.shape_cast %113 : vector<1024xf32> to vector<1x1024xf32>
    %c5_68 = arith.constant 5 : index
    %c0_69 = arith.constant 0 : index
    %115 = vector.load %arg2[%c5_68, %c0_69] : memref<9x1024xf32, #tpu.memory_space<vmem>>, vector<1x1024xf32>
    %116 = arith.mulf %115, %114 : vector<1x1024xf32>
    %117 = arith.addf %107, %116 : vector<1x1024xf32>
    %c0_70 = arith.constant 0 : index
    %c0_71 = arith.constant 0 : index
    %118 = vector.load %arg8[%c0_70, %c0_71] : memref<8x1024xf32, #tpu.memory_space<vmem>>, vector<8x1024xf32>
    %c1009_i32_72 = arith.constant 1009 : i32
    %119 = tpu.dynamic_rotate %118 by %c1009_i32_72 dim 1 : vector<8x1024xf32>, i32 -> vector<8x1024xf32>
    %120 = vector.extract_strided_slice %1 {offsets = [0, 6], sizes = [8, 1], strides = [1, 1]} : vector<8x9xf32> to vector<8x1xf32>
    %121 = vector.broadcast %120 : vector<8x1xf32> to vector<8x1024xf32>
    %122 = arith.mulf %119, %121 : vector<8x1024xf32>
    %cst_73 = arith.constant dense<0.000000e+00> : vector<1024xf32>
    %123 = vector.multi_reduction <add>, %122, %cst_73 [0] : vector<8x1024xf32> to vector<1024xf32>
    %124 = vector.shape_cast %123 : vector<1024xf32> to vector<1x1024xf32>
    %c6_74 = arith.constant 6 : index
    %c0_75 = arith.constant 0 : index
    %125 = vector.load %arg2[%c6_74, %c0_75] : memref<9x1024xf32, #tpu.memory_space<vmem>>, vector<1x1024xf32>
    %126 = arith.mulf %125, %124 : vector<1x1024xf32>
    %127 = arith.addf %117, %126 : vector<1x1024xf32>
    %c0_76 = arith.constant 0 : index
    %c0_77 = arith.constant 0 : index
    %128 = vector.load %arg8[%c0_76, %c0_77] : memref<8x1024xf32, #tpu.memory_space<vmem>>, vector<8x1024xf32>
    %c1008_i32_78 = arith.constant 1008 : i32
    %129 = tpu.dynamic_rotate %128 by %c1008_i32_78 dim 1 : vector<8x1024xf32>, i32 -> vector<8x1024xf32>
    %130 = vector.extract_strided_slice %1 {offsets = [0, 7], sizes = [8, 1], strides = [1, 1]} : vector<8x9xf32> to vector<8x1xf32>
    %131 = vector.broadcast %130 : vector<8x1xf32> to vector<8x1024xf32>
    %132 = arith.mulf %129, %131 : vector<8x1024xf32>
    %cst_79 = arith.constant dense<0.000000e+00> : vector<1024xf32>
    %133 = vector.multi_reduction <add>, %132, %cst_79 [0] : vector<8x1024xf32> to vector<1024xf32>
    %134 = vector.shape_cast %133 : vector<1024xf32> to vector<1x1024xf32>
    %c7_80 = arith.constant 7 : index
    %c0_81 = arith.constant 0 : index
    %135 = vector.load %arg2[%c7_80, %c0_81] : memref<9x1024xf32, #tpu.memory_space<vmem>>, vector<1x1024xf32>
    %136 = arith.mulf %135, %134 : vector<1x1024xf32>
    %137 = arith.addf %127, %136 : vector<1x1024xf32>
    %c0_82 = arith.constant 0 : index
    %c0_83 = arith.constant 0 : index
    %138 = vector.load %arg8[%c0_82, %c0_83] : memref<8x1024xf32, #tpu.memory_space<vmem>>, vector<8x1024xf32>
    %c1007_i32_84 = arith.constant 1007 : i32
    %139 = tpu.dynamic_rotate %138 by %c1007_i32_84 dim 1 : vector<8x1024xf32>, i32 -> vector<8x1024xf32>
    %140 = vector.extract_strided_slice %1 {offsets = [0, 8], sizes = [8, 1], strides = [1, 1]} : vector<8x9xf32> to vector<8x1xf32>
    %141 = vector.broadcast %140 : vector<8x1xf32> to vector<8x1024xf32>
    %142 = arith.mulf %139, %141 : vector<8x1024xf32>
    %cst_85 = arith.constant dense<0.000000e+00> : vector<1024xf32>
    %143 = vector.multi_reduction <add>, %142, %cst_85 [0] : vector<8x1024xf32> to vector<1024xf32>
    %144 = vector.shape_cast %143 : vector<1024xf32> to vector<1x1024xf32>
    %c8_86 = arith.constant 8 : index
    %c0_87 = arith.constant 0 : index
    %145 = vector.load %arg2[%c8_86, %c0_87] : memref<9x1024xf32, #tpu.memory_space<vmem>>, vector<1x1024xf32>
    %146 = arith.mulf %145, %144 : vector<1x1024xf32>
    %147 = arith.addf %137, %146 : vector<1x1024xf32>
    %148 = vector.broadcast %2 : f32 to vector<1x1024xf32>
    %149 = arith.addf %147, %148 : vector<1x1024xf32>
    %150 = arith.negf %149 : vector<1x1024xf32>
    %151 = math.exp %150 : vector<1x1024xf32>
    %cst_88 = arith.constant 1.000000e+00 : f32
    %152 = vector.broadcast %cst_88 : f32 to vector<1x1024xf32>
    %153 = arith.addf %152, %151 : vector<1x1024xf32>
    %154 = arith.divf %152, %153 : vector<1x1024xf32>
    %c0_89 = arith.constant 0 : index
    %155 = arith.index_cast %6 : i32 to index
    %156 = vector.load %arg6[%c0_89, %155] : memref<1x1024xf32, #tpu.memory_space<vmem>>, vector<1x1024xf32>
    tpu.vector_store %arg6[%c0_89, %155], %154 {strides = array<i32>} : memref<1x1024xf32, #tpu.memory_space<vmem>>, vector<1x1024xf32>,
    %c1_i32_90 = arith.constant 1 : i32
    return
  }
  func.func @transform_0(%arg0: i32) -> (i32, i32) {
    %c0_i32 = arith.constant 0 : i32
    %c0_i32_0 = arith.constant 0 : i32
    return %c0_i32, %arg0 : i32, i32
  }
  func.func @transform_1(%arg0: i32) -> (i32, i32) {
    %c0_i32 = arith.constant 0 : i32
    %c0_i32_0 = arith.constant 0 : i32
    %c0_i32_1 = arith.constant 0 : i32
    return %c0_i32, %c0_i32_0 : i32, i32
  }
  func.func @transform_2(%arg0: i32) -> (i32, i32) {
    %c0_i32 = arith.constant 0 : i32
    %c0_i32_0 = arith.constant 0 : i32
    %c0_i32_1 = arith.constant 0 : i32
    return %c0_i32, %c0_i32_0 : i32, i32
  }
  func.func @transform_3(%arg0: i32) -> (i32, i32) {
    %c0_i32 = arith.constant 0 : i32
    %c0_i32_0 = arith.constant 0 : i32
    %c0_i32_1 = arith.constant 0 : i32
    return %c0_i32, %c0_i32_0 : i32, i32
  }
  func.func @transform_4(%arg0: i32) -> i32 {
    %c0_i32 = arith.constant 0 : i32
    %c0_i32_0 = arith.constant 0 : i32
    return %c0_i32 : i32
  }
  func.func @transform_5(%arg0: i32) -> (i32, i32) {
    %c0_i32 = arith.constant 0 : i32
    %c0_i32_0 = arith.constant 0 : i32
    return %c0_i32, %arg0 : i32, i32
  }
}

</mosaic_0001>

<llo_original>
// kernel: simple_diff_cnn.1
$region0: #{simple_diff_cnn.1}
  #allocation0 [shape = 'u32[]', space=smem, size = 0x4, offset = 0x4, fixed_abs, tag = 'smem constant byte address 0x4 - core index']
  #allocation1 [shape = 'u32[144,128]{1,0:T(1,128)}', space=vmem, size = 0x12000, scoped, tag = 'internal scratch']
  #allocation2 [shape = 'f32[28,1024]{1,0:T(8,128)}', space=vmem, size = 0x20000, scoped, tag = 'scratch operand']
  #allocation3 [shape = 'f32[8,1024]{1,0:T(8,128)}', space=vmem, size = 0x8000, scoped, tag = 'scratch operand']
  #allocation4 [shape = 'f32[1]{0:T(128)S(6)}', space=smem, size = 0x200, scoped, tag = 'scoped memory for simple_diff_cnn.1']
  %s0 = inlined_call_operand.vmem [shape: f32[3,2048], index: 0, kind: input, shape index: {}]
  %s1 = inlined_call_operand.vmem [shape: f32[9,1024], index: 1, kind: input, shape index: {}]
  %s2 = inlined_call_operand.vmem [shape: f32[8,28], index: 2, kind: input, shape index: {}]
  %s3 = inlined_call_operand.vmem [shape: f32[8,9], index: 3, kind: input, shape index: {}]
  %s4 = inlined_call_operand.<no memory space> [shape: f32[1], index: 4, kind: input, shape index: {}]
  %s5 = inlined_call_operand.vmem [shape: f32[1,2048], index: 5, kind: output, shape index: {}]
  %s6 = sld [smem:[#allocation0]]
  $region53: #{simple_diff_cnn.1} parent=0
    _
  %s8 = ssub.s32 1, %s6
  %s9 = scalar_select 0, %s8, %s6
  %10 = sst [smem:[#allocation4]] %s4
  loop: start=0, step=1, limit=4
  $region2: #{simple_diff_cnn.1} parent=0 // loop_pre_header
    _
  $region3: #{simple_diff_cnn.1} parent=0 // loop_header
    %s12 = sphi 0, %s16
    %p13 = scmp.ge.s32.totalorder %s12, 4
    %s22 = sphi 0, %s24
    %s25 = sphi 0, %s22
    %s26 = sphi 0, %s25
    %s42 = sphi 0, %s26
    %s46 = sphi 0, %s46
    %s48 = sphi 0, %s46
    %s49 = sphi 0, %s48
    %s63 = sphi 0, %s49
    %s67 = sphi 0, %s67
    %s69 = sphi 0, %s67
    %s70 = sphi 0, %s69
    %s84 = sphi 0, %s70
    %s88 = sphi 0, %s88
    %s90 = sphi 0, %s88
    %s91 = sphi 0, %s90
    %s105 = sphi 0, %s91
    %s109 = sphi 0, %s109
    %s111 = sphi 0, %s109
    %s112 = sphi 0, %s111
    %s126 = sphi 0, %s112
    %s132 = sphi 0, %s134
    %s135 = sphi 0, %s132
    %s136 = sphi 0, %s135
    %s152 = sphi 0, %s136
  $region4: #{simple_diff_cnn.1} parent=0 // loop_header_branch
    %15 = sbr.rel (%p13) target = $region8
  $region5: #{simple_diff_cnn.1} parent=0 // loop_body
    %s17 = ssub.s32 %s12, 1
    %s18 = ssub.s32 %s12, 2
    %s19 = sadd.s32 %s12, 1
    %s20 = ssub.s32 %s12, %s19
    %p21 = scmp.eq.s32.totalorder %s20, 0
    %s23 = sadd.s32 %s22, 1
    %s24 = scalar_select %p21, %s22, %s23
    %p27 = pneg %p21
    %p28 = scmp.eq.s32.totalorder %s12, 1
    %p29 = por %p27, %p28
    %p30 = scmp.ne.s32.totalorder %s22, %s25
    %p31 = scmp.eq.s32.totalorder %s12, 0
    %p32 = por %p30, %p31
    %p33 = scmp.ne.s32.totalorder %s22, %s25
    %p34 = scmp.eq.s32.totalorder %s17, 1
    %p35 = por %p33, %p34
    %p36 = scmp.ne.s32.totalorder %s25, %s26
    %p37 = scmp.eq.s32.totalorder %s17, 0
    %p38 = por %p36, %p37
    %p39 = scmp.ne.s32.totalorder %s25, %s26
    %p40 = scmp.eq.s32.totalorder %s18, 1
    %p41 = por %p39, %p40
    %p43 = scmp.ne.s32.totalorder %s26, %s42
    %p44 = scmp.eq.s32.totalorder %s18, 0
    %p45 = por %p43, %p44
    %s47 = sadd.s32 %s46, 1
    %p50 = scmp.eq.s32.totalorder %s12, 1
    %p51 = scmp.ne.s32.totalorder %s46, %s48
    %p52 = scmp.eq.s32.totalorder %s12, 0
    %p53 = por %p51, %p52
    %p54 = scmp.ne.s32.totalorder %s46, %s48
    %p55 = scmp.eq.s32.totalorder %s17, 1
    %p56 = por %p54, %p55
    %p57 = scmp.ne.s32.totalorder %s48, %s49
    %p58 = scmp.eq.s32.totalorder %s17, 0
    %p59 = por %p57, %p58
    %p60 = scmp.ne.s32.totalorder %s48, %s49
    %p61 = scmp.eq.s32.totalorder %s18, 1
    %p62 = por %p60, %p61
    %p64 = scmp.ne.s32.totalorder %s49, %s63
    %p65 = scmp.eq.s32.totalorder %s18, 0
    %p66 = por %p64, %p65
    %s68 = sadd.s32 %s67, 1
    %p71 = scmp.eq.s32.totalorder %s12, 1
    %p72 = scmp.ne.s32.totalorder %s67, %s69
    %p73 = scmp.eq.s32.totalorder %s12, 0
    %p74 = por %p72, %p73
    %p75 = scmp.ne.s32.totalorder %s67, %s69
    %p76 = scmp.eq.s32.totalorder %s17, 1
    %p77 = por %p75, %p76
    %p78 = scmp.ne.s32.totalorder %s69, %s70
    %p79 = scmp.eq.s32.totalorder %s17, 0
    %p80 = por %p78, %p79
    %p81 = scmp.ne.s32.totalorder %s69, %s70
    %p82 = scmp.eq.s32.totalorder %s18, 1
    %p83 = por %p81, %p82
    %p85 = scmp.ne.s32.totalorder %s70, %s84
    %p86 = scmp.eq.s32.totalorder %s18, 0
    %p87 = por %p85, %p86
    %s89 = sadd.s32 %s88, 1
    %p92 = scmp.eq.s32.totalorder %s12, 1
    %p93 = scmp.ne.s32.totalorder %s88, %s90
    %p94 = scmp.eq.s32.totalorder %s12, 0
    %p95 = por %p93, %p94
    %p96 = scmp.ne.s32.totalorder %s88, %s90
    %p97 = scmp.eq.s32.totalorder %s17, 1
    %p98 = por %p96, %p97
    %p99 = scmp.ne.s32.totalorder %s90, %s91
    %p100 = scmp.eq.s32.totalorder %s17, 0
    %p101 = por %p99, %p100
    %p102 = scmp.ne.s32.totalorder %s90, %s91
    %p103 = scmp.eq.s32.totalorder %s18, 1
    %p104 = por %p102, %p103
    %p106 = scmp.ne.s32.totalorder %s91, %s105
    %p107 = scmp.eq.s32.totalorder %s18, 0
    %p108 = por %p106, %p107
    %s110 = sadd.s32 %s109, 1
    %p113 = scmp.eq.s32.totalorder %s12, 1
    %p114 = scmp.ne.s32.totalorder %s109, %s111
    %p115 = scmp.eq.s32.totalorder %s12, 0
    %p116 = por %p114, %p115
    %p117 = scmp.ne.s32.totalorder %s109, %s111
    %p118 = scmp.eq.s32.totalorder %s17, 1
    %p119 = por %p117, %p118
    %p120 = scmp.ne.s32.totalorder %s111, %s112
    %p121 = scmp.eq.s32.totalorder %s17, 0
    %p122 = por %p120, %p121
    %p123 = scmp.ne.s32.totalorder %s111, %s112
    %p124 = scmp.eq.s32.totalorder %s18, 1
    %p125 = por %p123, %p124
    %p127 = scmp.ne.s32.totalorder %s112, %s126
    %p128 = scmp.eq.s32.totalorder %s18, 0
    %p129 = por %p127, %p128
    %s130 = ssub.s32 %s12, %s19
    %p131 = scmp.eq.s32.totalorder %s130, 0
    %s133 = sadd.s32 %s132, 1
    %s134 = scalar_select %p131, %s132, %s133
    %p137 = pneg %p131
    %p138 = scmp.eq.s32.totalorder %s12, 1
    %p139 = por %p137, %p138
    %p140 = scmp.ne.s32.totalorder %s132, %s135
    %p141 = scmp.eq.s32.totalorder %s12, 0
    %p142 = por %p140, %p141
    %p143 = scmp.ne.s32.totalorder %s132, %s135
    %p144 = scmp.eq.s32.totalorder %s17, 1
    %p145 = por %p143, %p144
    %p146 = scmp.ne.s32.totalorder %s135, %s136
    %p147 = scmp.eq.s32.totalorder %s17, 0
    %p148 = por %p146, %p147
    %p149 = scmp.ne.s32.totalorder %s135, %s136
    %p150 = scmp.eq.s32.totalorder %s18, 1
    %p151 = por %p149, %p150
    %p153 = scmp.ne.s32.totalorder %s136, %s152
    %p154 = scmp.eq.s32.totalorder %s18, 0
    %p155 = por %p153, %p154
    %p156 = scmp.le.s32.totalorder 1, %s12
    %p157 = scmp.lt.s32.totalorder %s12, 3
    %p158 = pnand %p156, %p157
    %p159 = pneg %p158
    // Predicated region
    $region9: #{simple_diff_cnn.1} parent=5 // pred_check
      _
    $region10: #{simple_diff_cnn.1} parent=5 // pred_check_branch
      %161 = sbr.rel (%p158) target = $region12
    $region11: #{simple_diff_cnn.1} parent=5 // pred_region
      %s162 = ssub.s32 %s12, 1
      // Predicated region
      $region13: #{simple_diff_cnn.1} parent=11 // pred_check
        %p163 = pneg %p59
      $region14: #{simple_diff_cnn.1} parent=11 // pred_check_branch
        %165 = sbr.rel (%p163) target = $region16
      $region15: #{simple_diff_cnn.1} parent=11 // pred_region
        _
      $region16: #{simple_diff_cnn.1} parent=11 // pred_fallthru
        _
      // Predicated region
      $region17: #{simple_diff_cnn.1} parent=11 // pred_check
        %p166 = pneg %p80
      $region18: #{simple_diff_cnn.1} parent=11 // pred_check_branch
        %168 = sbr.rel (%p166) target = $region20
      $region19: #{simple_diff_cnn.1} parent=11 // pred_region
        _
      $region20: #{simple_diff_cnn.1} parent=11 // pred_fallthru
        _
      // Predicated region
      $region21: #{simple_diff_cnn.1} parent=11 // pred_check
        %p169 = pneg %p101
      $region22: #{simple_diff_cnn.1} parent=11 // pred_check_branch
        %171 = sbr.rel (%p169) target = $region24
      $region23: #{simple_diff_cnn.1} parent=11 // pred_region
        _
      $region24: #{simple_diff_cnn.1} parent=11 // pred_fallthru
        _
      // Predicated region
      $region25: #{simple_diff_cnn.1} parent=11 // pred_check
        %p172 = pneg %p122
      $region26: #{simple_diff_cnn.1} parent=11 // pred_check_branch
        %174 = sbr.rel (%p172) target = $region28
      $region27: #{simple_diff_cnn.1} parent=11 // pred_region
        _
      $region28: #{simple_diff_cnn.1} parent=11 // pred_fallthru
        _
    $region12: #{simple_diff_cnn.1} parent=5 // pred_fallthru
      _
    %p175 = scmp.lt.s32.totalorder %s12, 2
    // Predicated region
    $region29: #{simple_diff_cnn.1} parent=5 // pred_check
      %p176 = pneg %p175
    $region30: #{simple_diff_cnn.1} parent=5 // pred_check_branch
      %178 = sbr.rel (%p176) target = $region32
    $region31: #{simple_diff_cnn.1} parent=5 // pred_region
      // Predicated region
      $region33: #{simple_diff_cnn.1} parent=31 // pred_check
        %p179 = pneg %p32
      $region34: #{simple_diff_cnn.1} parent=31 // pred_check_branch
        %181 = sbr.rel (%p179) target = $region36
      $region35: #{simple_diff_cnn.1} parent=31 // pred_region
        %s182 = smul.u32 8, %s12
        %p183 = scmp.lt.s32.totalorder %s182, 15
        %s184 = scalar_select %p183, %s182, 15
        %s185 = smul.addr %s184, 4
        %s186 = scalar_lea.vmem %s0, %s185
        %s187 = smul.u32 8, %s12
      $region36: #{simple_diff_cnn.1} parent=31 // pred_fallthru
        _
    $region32: #{simple_diff_cnn.1} parent=5 // pred_fallthru
      _
    %p188 = scmp.le.s32.totalorder 1, %s12
    %p189 = scmp.lt.s32.totalorder %s12, 3
    %p190 = pnand %p188, %p189
    %p191 = pneg %p190
    // Predicated region
    $region37: #{simple_diff_cnn.1} parent=5 // pred_check
      _
    $region38: #{simple_diff_cnn.1} parent=5 // pred_check_branch
      %193 = sbr.rel (%p190) target = $region40
    $region39: #{simple_diff_cnn.1} parent=5 // pred_region
      %s194 = ssub.s32 %s12, 1
      %s195 = smul.u32 8, %s17
      %p196 = scmp.lt.s32.totalorder %s195, 15
      %s197 = scalar_select %p196, %s195, 15
      %s198 = smul.addr %s197, 4
      %s199 = scalar_lea.vmem %s0, %s198
      %p200 = pneg %p38
      %p201 = pneg %p35
      %p202 = pneg %p59
      %p203 = pneg %p56
      %p204 = pneg %p80
      %p205 = pneg %p77
      %p206 = pneg %p101
      %p207 = pneg %p98
      %p208 = pneg %p122
      %p209 = pneg %p119
      %p210 = pneg %p148
      %p211 = pneg %p145
      %s212 = smul.u32 8, %s17
      %p213 = scmp.lt.s32.totalorder %s212, 15
      %s214 = scalar_select %p213, %s212, 15
      %s215 = scalar_lea.vmem %s5, %s214
      %s216 = smul.u32 8, %s17
      %p217 = scmp.lt.s32.totalorder %s216, 15
      %s218 = scalar_select %p217, %s216, 15
      %s219 = smul.addr %s218, 4
      %s220 = scalar_lea.vmem %s0, %s219
      %s221 = smul.u32 8, %s17
      %s222 = smul.u32 8, %s17
      %p223 = scmp.lt.s32.totalorder %s222, 15
      %s224 = scalar_select %p223, %s222, 15
      %s225 = scalar_lea.vmem %s5, %s224
      %s226 = smul.u32 8, %s17
      %v227 = vld [vmem:[%s2] sm:$0xff]
      %v228 = vld [vmem:[%s3] sm:$0xff]
      %s229 = sld [smem:[#allocation4]]
      %s230 = scalar_lea.vmem [#allocation2], 195
      %231 = vst [vmem:[%s230] ss:$8 sm:$0xf] 1.0
      %232 = vst [vmem:[%s230] ss:$8 sm:$0xf0] 1.0
      %v233 = vld [vmem:[%s220] sm:$0x77]
      %v234 = vld [vmem:[%s220 + $0x8] sm:$0x77]
      %v235 = vld [vmem:[%s220 + $0x10] sm:$0x77]
      %v236 = vld [vmem:[%s220 + $0x18] sm:$0x77]
      %v241 = vcombine.high %v233, %v233
      %v242 = vcombine.high %v234, %v234
      %v243 = vcombine.high %v235, %v235
      %v244 = vcombine.high %v236, %v236
      %249 = vrot.lane.b32.xlu0 %v233, 17
      %v250 = vpop.permute.xlu0 %249
      %251 = vrot.lane.b32.xlu0 %v241, 17
      %v252 = vpop.permute.xlu0 %251
      %253 = vrot.lane.b32.xlu0 %v234, 17
      %v254 = vpop.permute.xlu0 %253
      %255 = vrot.lane.b32.xlu0 %v242, 17
      %v256 = vpop.permute.xlu0 %255
      %257 = vrot.lane.b32.xlu0 %v235, 17
      %v258 = vpop.permute.xlu0 %257
      %259 = vrot.lane.b32.xlu0 %v243, 17
      %v260 = vpop.permute.xlu0 %259
      %261 = vrot.lane.b32.xlu0 %v236, 17
      %v262 = vpop.permute.xlu0 %261
      %263 = vrot.lane.b32.xlu0 %v244, 17
      %v264 = vpop.permute.xlu0 %263
      %v265 = vlaneseq
      %v266 = vand.u32 %v265, 127
      %vm267 = vcmp.lt.s32.totalorder %v266, 17
      %v268 = vsel %vm267, %v262, %v264
      %v269 = vsel %vm267, %v260, %v262
      %v270 = vsel %vm267, %v258, %v260
      %v271 = vsel %vm267, %v256, %v258
      %v272 = vsel %vm267, %v254, %v256
      %v273 = vsel %vm267, %v252, %v254
      %v274 = vsel %vm267, %v250, %v252
      %v275 = vsel %vm267, %v264, %v250
      %v276 = vld [vmem:[%s1] ss:$8 sm:$0xf]
      %v277 = vld [vmem:[%s1] ss:$8 sm:$0xf0]
      %v278 = vor.u32 %v276, %v277
      %v280 = vlaneseq
      %v281 = vshrl.u32 %v280, 7
      %v282 = vsub.s32 0, %v281
      %v283 = vrot.slane %v278, %v282
      %v284 = vlaneseq
      %v285 = vshrl.u32 %v284, 7
      %v286 = vsub.s32 1, %v285
      %v287 = vrot.slane %v278, %v286
      %v288 = vlaneseq
      %v289 = vshrl.u32 %v288, 7
      %v290 = vsub.s32 2, %v289
      %v291 = vrot.slane %v278, %v290
      %v292 = vlaneseq
      %v293 = vshrl.u32 %v292, 7
      %v294 = vsub.s32 3, %v293
      %v295 = vrot.slane %v278, %v294
      %v296 = vlaneseq
      %v297 = vshrl.u32 %v296, 7
      %v298 = vsub.s32 4, %v297
      %v299 = vrot.slane %v278, %v298
      %v300 = vlaneseq
      %v301 = vshrl.u32 %v300, 7
      %v302 = vsub.s32 5, %v301
      %v303 = vrot.slane %v278, %v302
      %v304 = vlaneseq
      %v305 = vshrl.u32 %v304, 7
      %v306 = vsub.s32 6, %v305
      %v307 = vrot.slane %v278, %v306
      %v308 = vlaneseq
      %v309 = vshrl.u32 %v308, 7
      %v310 = vsub.s32 7, %v309
      %v311 = vrot.slane %v278, %v310
      %v320 = vmul.f32 %v275, %v283
      %v321 = vmul.f32 %v274, %v287
      %v322 = vmul.f32 %v273, %v291
      %v323 = vmul.f32 %v272, %v295
      %v324 = vmul.f32 %v271, %v299
      %v325 = vmul.f32 %v270, %v303
      %v326 = vmul.f32 %v269, %v307
      %v327 = vmul.f32 %v268, %v311
      %328 = vst [vmem:[#allocation2] sm:$0x7] %v320
      %329 = vst [vmem:[#allocation2 + $0x8] sm:$0x7] %v321
      %330 = vst [vmem:[#allocation2 + $0x10] sm:$0x7] %v322
      %331 = vst [vmem:[#allocation2 + $0x18] sm:$0x7] %v323
      %332 = vst [vmem:[#allocation2 + $0x20] sm:$0x7] %v324
      %333 = vst [vmem:[#allocation2 + $0x28] sm:$0x7] %v325
      %334 = vst [vmem:[#allocation2 + $0x30] sm:$0x7] %v326
      %335 = vst [vmem:[#allocation2 + $0x38] sm:$0x7] %v327
      %336 = vrot.lane.b32.xlu0 %v233, 16
      %v337 = vpop.permute.xlu0 %336
      %338 = vrot.lane.b32.xlu0 %v241, 16
      %v339 = vpop.permute.xlu0 %338
      %340 = vrot.lane.b32.xlu0 %v234, 16
      %v341 = vpop.permute.xlu0 %340
      %342 = vrot.lane.b32.xlu0 %v242, 16
      %v343 = vpop.permute.xlu0 %342
      %344 = vrot.lane.b32.xlu0 %v235, 16
      %v345 = vpop.permute.xlu0 %344
      %346 = vrot.lane.b32.xlu0 %v243, 16
      %v347 = vpop.permute.xlu0 %346
      %348 = vrot.lane.b32.xlu0 %v236, 16
      %v349 = vpop.permute.xlu0 %348
      %350 = vrot.lane.b32.xlu0 %v244, 16
      %v351 = vpop.permute.xlu0 %350
      %vm352 = vcmp.lt.s32.totalorder %v266, 16
      %v353 = vsel %vm352, %v349, %v351
      %v354 = vsel %vm352, %v347, %v349
      %v355 = vsel %vm352, %v345, %v347
      %v356 = vsel %vm352, %v343, %v345
      %v357 = vsel %vm352, %v341, %v343
      %v358 = vsel %vm352, %v339, %v341
      %v359 = vsel %vm352, %v337, %v339
      %v360 = vsel %vm352, %v351, %v337
      %s361 = scalar_lea.vmem %s1, 1
      %v362 = vld [vmem:[%s361] ss:$8 sm:$0xf]
      %v363 = vld [vmem:[%s361] ss:$8 sm:$0xf0]
      %v364 = vor.u32 %v362, %v363
      %v366 = vlaneseq
      %v367 = vshrl.u32 %v366, 7
      %v368 = vsub.s32 0, %v367
      %v369 = vrot.slane %v364, %v368
      %v370 = vlaneseq
      %v371 = vshrl.u32 %v370, 7
      %v372 = vsub.s32 1, %v371
      %v373 = vrot.slane %v364, %v372
      %v374 = vlaneseq
      %v375 = vshrl.u32 %v374, 7
      %v376 = vsub.s32 2, %v375
      %v377 = vrot.slane %v364, %v376
      %v378 = vlaneseq
      %v379 = vshrl.u32 %v378, 7
      %v380 = vsub.s32 3, %v379
      %v381 = vrot.slane %v364, %v380
      %v382 = vlaneseq
      %v383 = vshrl.u32 %v382, 7
      %v384 = vsub.s32 4, %v383
      %v385 = vrot.slane %v364, %v384
      %v386 = vlaneseq
      %v387 = vshrl.u32 %v386, 7
      %v388 = vsub.s32 5, %v387
      %v389 = vrot.slane %v364, %v388
      %v390 = vlaneseq
      %v391 = vshrl.u32 %v390, 7
      %v392 = vsub.s32 6, %v391
      %v393 = vrot.slane %v364, %v392
      %v394 = vlaneseq
      %v395 = vshrl.u32 %v394, 7
      %v396 = vsub.s32 7, %v395
      %v397 = vrot.slane %v364, %v396
      %v406 = vmul.f32 %v360, %v369
      %v407 = vmul.f32 %v359, %v373
      %v408 = vmul.f32 %v358, %v377
      %v409 = vmul.f32 %v357, %v381
      %v410 = vmul.f32 %v356, %v385
      %v411 = vmul.f32 %v355, %v389
      %v412 = vmul.f32 %v354, %v393
      %v413 = vmul.f32 %v353, %v397
      %v422 = vrot.slane %v406, 5
      %v423 = vrot.slane %v407, 5
      %v424 = vrot.slane %v408, 5
      %v425 = vrot.slane %v409, 5
      %v426 = vrot.slane %v410, 5
      %v427 = vrot.slane %v411, 5
      %v428 = vrot.slane %v412, 5
      %v429 = vrot.slane %v413, 5
      %438 = vst [vmem:[#allocation2] sm:$0x38] %v422
      %439 = vst [vmem:[#allocation2 + $0x8] sm:$0x38] %v423
      %440 = vst [vmem:[#allocation2 + $0x10] sm:$0x38] %v424
      %441 = vst [vmem:[#allocation2 + $0x18] sm:$0x38] %v425
      %442 = vst [vmem:[#allocation2 + $0x20] sm:$0x38] %v426
      %443 = vst [vmem:[#allocation2 + $0x28] sm:$0x38] %v427
      %444 = vst [vmem:[#allocation2 + $0x30] sm:$0x38] %v428
      %445 = vst [vmem:[#allocation2 + $0x38] sm:$0x38] %v429
      %446 = vrot.lane.b32.xlu0 %v233, 15
      %v447 = vpop.permute.xlu0 %446
      %448 = vrot.lane.b32.xlu0 %v241, 15
      %v449 = vpop.permute.xlu0 %448
      %450 = vrot.lane.b32.xlu0 %v234, 15
      %v451 = vpop.permute.xlu0 %450
      %452 = vrot.lane.b32.xlu0 %v242, 15
      %v453 = vpop.permute.xlu0 %452
      %454 = vrot.lane.b32.xlu0 %v235, 15
      %v455 = vpop.permute.xlu0 %454
      %456 = vrot.lane.b32.xlu0 %v243, 15
      %v457 = vpop.permute.xlu0 %456
      %458 = vrot.lane.b32.xlu0 %v236, 15
      %v459 = vpop.permute.xlu0 %458
      %460 = vrot.lane.b32.xlu0 %v244, 15
      %v461 = vpop.permute.xlu0 %460
      %vm462 = vcmp.lt.s32.totalorder %v266, 15
      %v463 = vsel %vm462, %v459, %v461
      %v464 = vsel %vm462, %v457, %v459
      %v465 = vsel %vm462, %v455, %v457
      %v466 = vsel %vm462, %v453, %v455
      %v467 = vsel %vm462, %v451, %v453
      %v468 = vsel %vm462, %v449, %v451
      %v469 = vsel %vm462, %v447, %v449
      %v470 = vsel %vm462, %v461, %v447
      %s471 = scalar_lea.vmem %s1, 2
      %v472 = vld [vmem:[%s471] ss:$8 sm:$0xf]
      %v473 = vld [vmem:[%s471] ss:$8 sm:$0xf0]
      %v474 = vor.u32 %v472, %v473
      %v476 = vlaneseq
      %v477 = vshrl.u32 %v476, 7
      %v478 = vsub.s32 0, %v477
      %v479 = vrot.slane %v474, %v478
      %v480 = vlaneseq
      %v481 = vshrl.u32 %v480, 7
      %v482 = vsub.s32 1, %v481
      %v483 = vrot.slane %v474, %v482
      %v484 = vlaneseq
      %v485 = vshrl.u32 %v484, 7
      %v486 = vsub.s32 2, %v485
      %v487 = vrot.slane %v474, %v486
      %v488 = vlaneseq
      %v489 = vshrl.u32 %v488, 7
      %v490 = vsub.s32 3, %v489
      %v491 = vrot.slane %v474, %v490
      %v492 = vlaneseq
      %v493 = vshrl.u32 %v492, 7
      %v494 = vsub.s32 4, %v493
      %v495 = vrot.slane %v474, %v494
      %v496 = vlaneseq
      %v497 = vshrl.u32 %v496, 7
      %v498 = vsub.s32 5, %v497
      %v499 = vrot.slane %v474, %v498
      %v500 = vlaneseq
      %v501 = vshrl.u32 %v500, 7
      %v502 = vsub.s32 6, %v501
      %v503 = vrot.slane %v474, %v502
      %v504 = vlaneseq
      %v505 = vshrl.u32 %v504, 7
      %v506 = vsub.s32 7, %v505
      %v507 = vrot.slane %v474, %v506
      %v516 = vmul.f32 %v470, %v479
      %v517 = vmul.f32 %v469, %v483
      %v518 = vmul.f32 %v468, %v487
      %v519 = vmul.f32 %v467, %v491
      %v520 = vmul.f32 %v466, %v495
      %v521 = vmul.f32 %v465, %v499
      %v522 = vmul.f32 %v464, %v503
      %v523 = vmul.f32 %v463, %v507
      %v532 = vrot.slane %v516, 2
      %v533 = vrot.slane %v517, 2
      %v534 = vrot.slane %v518, 2
      %v535 = vrot.slane %v519, 2
      %v536 = vrot.slane %v520, 2
      %v537 = vrot.slane %v521, 2
      %v538 = vrot.slane %v522, 2
      %v539 = vrot.slane %v523, 2
      %548 = vst [vmem:[#allocation2] sm:$0xc0] %v532
      %549 = vst [vmem:[#allocation2 + $0x8] sm:$0xc0] %v533
      %550 = vst [vmem:[#allocation2 + $0x10] sm:$0xc0] %v534
      %551 = vst [vmem:[#allocation2 + $0x18] sm:$0xc0] %v535
      %552 = vst [vmem:[#allocation2 + $0x20] sm:$0xc0] %v536
      %553 = vst [vmem:[#allocation2 + $0x28] sm:$0xc0] %v537
      %554 = vst [vmem:[#allocation2 + $0x30] sm:$0xc0] %v538
      %555 = vst [vmem:[#allocation2 + $0x38] sm:$0xc0] %v539
      %556 = vst [vmem:[#allocation2 + $0x40] sm:$0x1] %v532
      %557 = vst [vmem:[#allocation2 + $0x48] sm:$0x1] %v533
      %558 = vst [vmem:[#allocation2 + $0x50] sm:$0x1] %v534
      %559 = vst [vmem:[#allocation2 + $0x58] sm:$0x1] %v535
      %560 = vst [vmem:[#allocation2 + $0x60] sm:$0x1] %v536
      %561 = vst [vmem:[#allocation2 + $0x68] sm:$0x1] %v537
      %562 = vst [vmem:[#allocation2 + $0x70] sm:$0x1] %v538
      %563 = vst [vmem:[#allocation2 + $0x78] sm:$0x1] %v539
      %564 = vrot.lane.b32.xlu0 %v233, 1
      %v565 = vpop.permute.xlu0 %564
      %566 = vrot.lane.b32.xlu0 %v241, 1
      %v567 = vpop.permute.xlu0 %566
      %568 = vrot.lane.b32.xlu0 %v234, 1
      %v569 = vpop.permute.xlu0 %568
      %570 = vrot.lane.b32.xlu0 %v242, 1
      %v571 = vpop.permute.xlu0 %570
      %572 = vrot.lane.b32.xlu0 %v235, 1
      %v573 = vpop.permute.xlu0 %572
      %574 = vrot.lane.b32.xlu0 %v243, 1
      %v575 = vpop.permute.xlu0 %574
      %576 = vrot.lane.b32.xlu0 %v236, 1
      %v577 = vpop.permute.xlu0 %576
      %578 = vrot.lane.b32.xlu0 %v244, 1
      %v579 = vpop.permute.xlu0 %578
      %vm580 = vcmp.lt.s32.totalorder %v266, 1
      %v581 = vsel %vm580, %v577, %v579
      %v582 = vsel %vm580, %v575, %v577
      %v583 = vsel %vm580, %v573, %v575
      %v584 = vsel %vm580, %v571, %v573
      %v585 = vsel %vm580, %v569, %v571
      %v586 = vsel %vm580, %v567, %v569
      %v587 = vsel %vm580, %v565, %v567
      %v588 = vsel %vm580, %v579, %v565
      %s589 = scalar_lea.vmem %s1, 3
      %v590 = vld [vmem:[%s589] ss:$8 sm:$0xf]
      %v591 = vld [vmem:[%s589] ss:$8 sm:$0xf0]
      %v592 = vor.u32 %v590, %v591
      %v594 = vlaneseq
      %v595 = vshrl.u32 %v594, 7
      %v596 = vsub.s32 0, %v595
      %v597 = vrot.slane %v592, %v596
      %v598 = vlaneseq
      %v599 = vshrl.u32 %v598, 7
      %v600 = vsub.s32 1, %v599
      %v601 = vrot.slane %v592, %v600
      %v602 = vlaneseq
      %v603 = vshrl.u32 %v602, 7
      %v604 = vsub.s32 2, %v603
      %v605 = vrot.slane %v592, %v604
      %v606 = vlaneseq
      %v607 = vshrl.u32 %v606, 7
      %v608 = vsub.s32 3, %v607
      %v609 = vrot.slane %v592, %v608
      %v610 = vlaneseq
      %v611 = vshrl.u32 %v610, 7
      %v612 = vsub.s32 4, %v611
      %v613 = vrot.slane %v592, %v612
      %v614 = vlaneseq
      %v615 = vshrl.u32 %v614, 7
      %v616 = vsub.s32 5, %v615
      %v617 = vrot.slane %v592, %v616
      %v618 = vlaneseq
      %v619 = vshrl.u32 %v618, 7
      %v620 = vsub.s32 6, %v619
      %v621 = vrot.slane %v592, %v620
      %v622 = vlaneseq
      %v623 = vshrl.u32 %v622, 7
      %v624 = vsub.s32 7, %v623
      %v625 = vrot.slane %v592, %v624
      %v634 = vmul.f32 %v588, %v597
      %v635 = vmul.f32 %v587, %v601
      %v636 = vmul.f32 %v586, %v605
      %v637 = vmul.f32 %v585, %v609
      %v638 = vmul.f32 %v584, %v613
      %v639 = vmul.f32 %v583, %v617
      %v640 = vmul.f32 %v582, %v621
      %v641 = vmul.f32 %v581, %v625
      %v650 = vrot.slane %v634, 7
      %v651 = vrot.slane %v635, 7
      %v652 = vrot.slane %v636, 7
      %v653 = vrot.slane %v637, 7
      %v654 = vrot.slane %v638, 7
      %v655 = vrot.slane %v639, 7
      %v656 = vrot.slane %v640, 7
      %v657 = vrot.slane %v641, 7
      %666 = vst [vmem:[#allocation2 + $0x40] sm:$0xe] %v650
      %667 = vst [vmem:[#allocation2 + $0x48] sm:$0xe] %v651
      %668 = vst [vmem:[#allocation2 + $0x50] sm:$0xe] %v652
      %669 = vst [vmem:[#allocation2 + $0x58] sm:$0xe] %v653
      %670 = vst [vmem:[#allocation2 + $0x60] sm:$0xe] %v654
      %671 = vst [vmem:[#allocation2 + $0x68] sm:$0xe] %v655
      %672 = vst [vmem:[#allocation2 + $0x70] sm:$0xe] %v656
      %673 = vst [vmem:[#allocation2 + $0x78] sm:$0xe] %v657
      %s674 = scalar_lea.vmem %s1, 4
      %v675 = vld [vmem:[%s674] ss:$8 sm:$0xf]
      %v676 = vld [vmem:[%s674] ss:$8 sm:$0xf0]
      %v677 = vor.u32 %v675, %v676
      %v679 = vlaneseq
      %v680 = vshrl.u32 %v679, 7
      %v681 = vsub.s32 0, %v680
      %v682 = vrot.slane %v677, %v681
      %v683 = vlaneseq
      %v684 = vshrl.u32 %v683, 7
      %v685 = vsub.s32 1, %v684
      %v686 = vrot.slane %v677, %v685
      %v687 = vlaneseq
      %v688 = vshrl.u32 %v687, 7
      %v689 = vsub.s32 2, %v688
      %v690 = vrot.slane %v677, %v689
      %v691 = vlaneseq
      %v692 = vshrl.u32 %v691, 7
      %v693 = vsub.s32 3, %v692
      %v694 = vrot.slane %v677, %v693
      %v695 = vlaneseq
      %v696 = vshrl.u32 %v695, 7
      %v697 = vsub.s32 4, %v696
      %v698 = vrot.slane %v677, %v697
      %v699 = vlaneseq
      %v700 = vshrl.u32 %v699, 7
      %v701 = vsub.s32 5, %v700
      %v702 = vrot.slane %v677, %v701
      %v703 = vlaneseq
      %v704 = vshrl.u32 %v703, 7
      %v705 = vsub.s32 6, %v704
      %v706 = vrot.slane %v677, %v705
      %v707 = vlaneseq
      %v708 = vshrl.u32 %v707, 7
      %v709 = vsub.s32 7, %v708
      %v710 = vrot.slane %v677, %v709
      %v711 = vcombine.low %v682, %v686
      %v712 = vcombine.low %v690, %v694
      %v713 = vcombine.low %v698, %v702
      %v714 = vcombine.low %v706, %v710
      %v719 = vmul.f32 %v233, %v711
      %v720 = vmul.f32 %v234, %v712
      %v721 = vmul.f32 %v235, %v713
      %v722 = vmul.f32 %v236, %v714
      %v727 = vcombine.low %v719, %v719
      %v728 = vcombine.low %v720, %v720
      %v729 = vcombine.low %v721, %v721
      %v730 = vcombine.low %v722, %v722
      %735 = vst [vmem:[#allocation2 + $0x40] sm:$0x70] %v727
      %736 = vst [vmem:[#allocation2 + $0x48] sm:$0x70] %v719
      %737 = vst [vmem:[#allocation2 + $0x50] sm:$0x70] %v728
      %738 = vst [vmem:[#allocation2 + $0x58] sm:$0x70] %v720
      %739 = vst [vmem:[#allocation2 + $0x60] sm:$0x70] %v729
      %740 = vst [vmem:[#allocation2 + $0x68] sm:$0x70] %v721
      %741 = vst [vmem:[#allocation2 + $0x70] sm:$0x70] %v730
      %742 = vst [vmem:[#allocation2 + $0x78] sm:$0x70] %v722
      %743 = vrot.lane.b32.xlu0 %v233, 127
      %v744 = vpop.permute.xlu0 %743
      %745 = vrot.lane.b32.xlu0 %v241, 127
      %v746 = vpop.permute.xlu0 %745
      %747 = vrot.lane.b32.xlu0 %v234, 127
      %v748 = vpop.permute.xlu0 %747
      %749 = vrot.lane.b32.xlu0 %v242, 127
      %v750 = vpop.permute.xlu0 %749
      %751 = vrot.lane.b32.xlu0 %v235, 127
      %v752 = vpop.permute.xlu0 %751
      %753 = vrot.lane.b32.xlu0 %v243, 127
      %v754 = vpop.permute.xlu0 %753
      %755 = vrot.lane.b32.xlu0 %v236, 127
      %v756 = vpop.permute.xlu0 %755
      %757 = vrot.lane.b32.xlu0 %v244, 127
      %v758 = vpop.permute.xlu0 %757
      %vm759 = vcmp.lt.s32.totalorder %v266, 127
      %v760 = vsel %vm759, %v756, %v758
      %v761 = vsel %vm759, %v754, %v756
      %v762 = vsel %vm759, %v752, %v754
      %v763 = vsel %vm759, %v750, %v752
      %v764 = vsel %vm759, %v748, %v750
      %v765 = vsel %vm759, %v746, %v748
      %v766 = vsel %vm759, %v744, %v746
      %v767 = vsel %vm759, %v758, %v744
      %s768 = scalar_lea.vmem %s1, 5
      %v769 = vld [vmem:[%s768] ss:$8 sm:$0xf]
      %v770 = vld [vmem:[%s768] ss:$8 sm:$0xf0]
      %v771 = vor.u32 %v769, %v770
      %v773 = vlaneseq
      %v774 = vshrl.u32 %v773, 7
      %v775 = vsub.s32 0, %v774
      %v776 = vrot.slane %v771, %v775
      %v777 = vlaneseq
      %v778 = vshrl.u32 %v777, 7
      %v779 = vsub.s32 1, %v778
      %v780 = vrot.slane %v771, %v779
      %v781 = vlaneseq
      %v782 = vshrl.u32 %v781, 7
      %v783 = vsub.s32 2, %v782
      %v784 = vrot.slane %v771, %v783
      %v785 = vlaneseq
      %v786 = vshrl.u32 %v785, 7
      %v787 = vsub.s32 3, %v786
      %v788 = vrot.slane %v771, %v787
      %v789 = vlaneseq
      %v790 = vshrl.u32 %v789, 7
      %v791 = vsub.s32 4, %v790
      %v792 = vrot.slane %v771, %v791
      %v793 = vlaneseq
      %v794 = vshrl.u32 %v793, 7
      %v795 = vsub.s32 5, %v794
      %v796 = vrot.slane %v771, %v795
      %v797 = vlaneseq
      %v798 = vshrl.u32 %v797, 7
      %v799 = vsub.s32 6, %v798
      %v800 = vrot.slane %v771, %v799
      %v801 = vlaneseq
      %v802 = vshrl.u32 %v801, 7
      %v803 = vsub.s32 7, %v802
      %v804 = vrot.slane %v771, %v803
      %v813 = vmul.f32 %v766, %v776
      %v814 = vmul.f32 %v765, %v780
      %v815 = vmul.f32 %v764, %v784
      %v816 = vmul.f32 %v763, %v788
      %v817 = vmul.f32 %v762, %v792
      %v818 = vmul.f32 %v761, %v796
      %v819 = vmul.f32 %v760, %v800
      %v820 = vmul.f32 %v767, %v804
      %v829 = vrot.slane %v813, 1
      %v830 = vrot.slane %v814, 1
      %v831 = vrot.slane %v815, 1
      %v832 = vrot.slane %v816, 1
      %v833 = vrot.slane %v817, 1
      %v834 = vrot.slane %v818, 1
      %v835 = vrot.slane %v819, 1
      %v836 = vrot.slane %v820, 1
      %845 = vst [vmem:[#allocation2 + $0x40] sm:$0x80] %v829
      %846 = vst [vmem:[#allocation2 + $0x48] sm:$0x80] %v830
      %847 = vst [vmem:[#allocation2 + $0x50] sm:$0x80] %v831
      %848 = vst [vmem:[#allocation2 + $0x58] sm:$0x80] %v832
      %849 = vst [vmem:[#allocation2 + $0x60] sm:$0x80] %v833
      %850 = vst [vmem:[#allocation2 + $0x68] sm:$0x80] %v834
      %851 = vst [vmem:[#allocation2 + $0x70] sm:$0x80] %v835
      %852 = vst [vmem:[#allocation2 + $0x78] sm:$0x80] %v836
      %853 = vst [vmem:[#allocation2 + $0x80] sm:$0x3] %v829
      %854 = vst [vmem:[#allocation2 + $0x88] sm:$0x3] %v830
      %855 = vst [vmem:[#allocation2 + $0x90] sm:$0x3] %v831
      %856 = vst [vmem:[#allocation2 + $0x98] sm:$0x3] %v832
      %857 = vst [vmem:[#allocation2 + $0xa0] sm:$0x3] %v833
      %858 = vst [vmem:[#allocation2 + $0xa8] sm:$0x3] %v834
      %859 = vst [vmem:[#allocation2 + $0xb0] sm:$0x3] %v835
      %860 = vst [vmem:[#allocation2 + $0xb8] sm:$0x3] %v836
      %861 = vrot.lane.b32.xlu0 %v233, 113
      %v862 = vpop.permute.xlu0 %861
      %863 = vrot.lane.b32.xlu0 %v241, 113
      %v864 = vpop.permute.xlu0 %863
      %865 = vrot.lane.b32.xlu0 %v234, 113
      %v866 = vpop.permute.xlu0 %865
      %867 = vrot.lane.b32.xlu0 %v242, 113
      %v868 = vpop.permute.xlu0 %867
      %869 = vrot.lane.b32.xlu0 %v235, 113
      %v870 = vpop.permute.xlu0 %869
      %871 = vrot.lane.b32.xlu0 %v243, 113
      %v872 = vpop.permute.xlu0 %871
      %873 = vrot.lane.b32.xlu0 %v236, 113
      %v874 = vpop.permute.xlu0 %873
      %875 = vrot.lane.b32.xlu0 %v244, 113
      %v876 = vpop.permute.xlu0 %875
      %vm877 = vcmp.lt.s32.totalorder %v266, 113
      %v878 = vsel %vm877, %v874, %v876
      %v879 = vsel %vm877, %v872, %v874
      %v880 = vsel %vm877, %v870, %v872
      %v881 = vsel %vm877, %v868, %v870
      %v882 = vsel %vm877, %v866, %v868
      %v883 = vsel %vm877, %v864, %v866
      %v884 = vsel %vm877, %v862, %v864
      %v885 = vsel %vm877, %v876, %v862
      %s886 = scalar_lea.vmem %s1, 6
      %v887 = vld [vmem:[%s886] ss:$8 sm:$0xf]
      %v888 = vld [vmem:[%s886] ss:$8 sm:$0xf0]
      %v889 = vor.u32 %v887, %v888
      %v891 = vlaneseq
      %v892 = vshrl.u32 %v891, 7
      %v893 = vsub.s32 0, %v892
      %v894 = vrot.slane %v889, %v893
      %v895 = vlaneseq
      %v896 = vshrl.u32 %v895, 7
      %v897 = vsub.s32 1, %v896
      %v898 = vrot.slane %v889, %v897
      %v899 = vlaneseq
      %v900 = vshrl.u32 %v899, 7
      %v901 = vsub.s32 2, %v900
      %v902 = vrot.slane %v889, %v901
      %v903 = vlaneseq
      %v904 = vshrl.u32 %v903, 7
      %v905 = vsub.s32 3, %v904
      %v906 = vrot.slane %v889, %v905
      %v907 = vlaneseq
      %v908 = vshrl.u32 %v907, 7
      %v909 = vsub.s32 4, %v908
      %v910 = vrot.slane %v889, %v909
      %v911 = vlaneseq
      %v912 = vshrl.u32 %v911, 7
      %v913 = vsub.s32 5, %v912
      %v914 = vrot.slane %v889, %v913
      %v915 = vlaneseq
      %v916 = vshrl.u32 %v915, 7
      %v917 = vsub.s32 6, %v916
      %v918 = vrot.slane %v889, %v917
      %v919 = vlaneseq
      %v920 = vshrl.u32 %v919, 7
      %v921 = vsub.s32 7, %v920
      %v922 = vrot.slane %v889, %v921
      %v931 = vmul.f32 %v884, %v894
      %v932 = vmul.f32 %v883, %v898
      %v933 = vmul.f32 %v882, %v902
      %v934 = vmul.f32 %v881, %v906
      %v935 = vmul.f32 %v880, %v910
      %v936 = vmul.f32 %v879, %v914
      %v937 = vmul.f32 %v878, %v918
      %v938 = vmul.f32 %v885, %v922
      %v947 = vrot.slane %v931, 6
      %v948 = vrot.slane %v932, 6
      %v949 = vrot.slane %v933, 6
      %v950 = vrot.slane %v934, 6
      %v951 = vrot.slane %v935, 6
      %v952 = vrot.slane %v936, 6
      %v953 = vrot.slane %v937, 6
      %v954 = vrot.slane %v938, 6
      %963 = vst [vmem:[#allocation2 + $0x80] sm:$0x1c] %v947
      %964 = vst [vmem:[#allocation2 + $0x88] sm:$0x1c] %v948
      %965 = vst [vmem:[#allocation2 + $0x90] sm:$0x1c] %v949
      %966 = vst [vmem:[#allocation2 + $0x98] sm:$0x1c] %v950
      %967 = vst [vmem:[#allocation2 + $0xa0] sm:$0x1c] %v951
      %968 = vst [vmem:[#allocation2 + $0xa8] sm:$0x1c] %v952
      %969 = vst [vmem:[#allocation2 + $0xb0] sm:$0x1c] %v953
      %970 = vst [vmem:[#allocation2 + $0xb8] sm:$0x1c] %v954
      %971 = vrot.lane.b32.xlu0 %v233, 112
      %v972 = vpop.permute.xlu0 %971
      %973 = vrot.lane.b32.xlu0 %v241, 112
      %v974 = vpop.permute.xlu0 %973
      %975 = vrot.lane.b32.xlu0 %v234, 112
      %v976 = vpop.permute.xlu0 %975
      %977 = vrot.lane.b32.xlu0 %v242, 112
      %v978 = vpop.permute.xlu0 %977
      %979 = vrot.lane.b32.xlu0 %v235, 112
      %v980 = vpop.permute.xlu0 %979
      %981 = vrot.lane.b32.xlu0 %v243, 112
      %v982 = vpop.permute.xlu0 %981
      %983 = vrot.lane.b32.xlu0 %v236, 112
      %v984 = vpop.permute.xlu0 %983
      %985 = vrot.lane.b32.xlu0 %v244, 112
      %v986 = vpop.permute.xlu0 %985
      %vm987 = vcmp.lt.s32.totalorder %v266, 112
      %v988 = vsel %vm987, %v984, %v986
      %v989 = vsel %vm987, %v982, %v984
      %v990 = vsel %vm987, %v980, %v982
      %v991 = vsel %vm987, %v978, %v980
      %v992 = vsel %vm987, %v976, %v978
      %v993 = vsel %vm987, %v974, %v976
      %v994 = vsel %vm987, %v972, %v974
      %v995 = vsel %vm987, %v986, %v972
      %s996 = scalar_lea.vmem %s1, 7
      %v997 = vld [vmem:[%s996] ss:$8 sm:$0xf]
      %v998 = vld [vmem:[%s996] ss:$8 sm:$0xf0]
      %v999 = vor.u32 %v997, %v998
      %v1001 = vlaneseq
      %v1002 = vshrl.u32 %v1001, 7
      %v1003 = vsub.s32 0, %v1002
      %v1004 = vrot.slane %v999, %v1003
      %v1005 = vlaneseq
      %v1006 = vshrl.u32 %v1005, 7
      %v1007 = vsub.s32 1, %v1006
      %v1008 = vrot.slane %v999, %v1007
      %v1009 = vlaneseq
      %v1010 = vshrl.u32 %v1009, 7
      %v1011 = vsub.s32 2, %v1010
      %v1012 = vrot.slane %v999, %v1011
      %v1013 = vlaneseq
      %v1014 = vshrl.u32 %v1013, 7
      %v1015 = vsub.s32 3, %v1014
      %v1016 = vrot.slane %v999, %v1015
      %v1017 = vlaneseq
      %v1018 = vshrl.u32 %v1017, 7
      %v1019 = vsub.s32 4, %v1018
      %v1020 = vrot.slane %v999, %v1019
      %v1021 = vlaneseq
      %v1022 = vshrl.u32 %v1021, 7
      %v1023 = vsub.s32 5, %v1022
      %v1024 = vrot.slane %v999, %v1023
      %v1025 = vlaneseq
      %v1026 = vshrl.u32 %v1025, 7
      %v1027 = vsub.s32 6, %v1026
      %v1028 = vrot.slane %v999, %v1027
      %v1029 = vlaneseq
      %v1030 = vshrl.u32 %v1029, 7
      %v1031 = vsub.s32 7, %v1030
      %v1032 = vrot.slane %v999, %v1031
      %v1041 = vmul.f32 %v994, %v1004
      %v1042 = vmul.f32 %v993, %v1008
      %v1043 = vmul.f32 %v992, %v1012
      %v1044 = vmul.f32 %v991, %v1016
      %v1045 = vmul.f32 %v990, %v1020
      %v1046 = vmul.f32 %v989, %v1024
      %v1047 = vmul.f32 %v988, %v1028
      %v1048 = vmul.f32 %v995, %v1032
      %v1057 = vrot.slane %v1041, 3
      %v1058 = vrot.slane %v1042, 3
      %v1059 = vrot.slane %v1043, 3
      %v1060 = vrot.slane %v1044, 3
      %v1061 = vrot.slane %v1045, 3
      %v1062 = vrot.slane %v1046, 3
      %v1063 = vrot.slane %v1047, 3
      %v1064 = vrot.slane %v1048, 3
      %1073 = vst [vmem:[#allocation2 + $0x80] sm:$0xe0] %v1057
      %1074 = vst [vmem:[#allocation2 + $0x88] sm:$0xe0] %v1058
      %1075 = vst [vmem:[#allocation2 + $0x90] sm:$0xe0] %v1059
      %1076 = vst [vmem:[#allocation2 + $0x98] sm:$0xe0] %v1060
      %1077 = vst [vmem:[#allocation2 + $0xa0] sm:$0xe0] %v1061
      %1078 = vst [vmem:[#allocation2 + $0xa8] sm:$0xe0] %v1062
      %1079 = vst [vmem:[#allocation2 + $0xb0] sm:$0xe0] %v1063
      %1080 = vst [vmem:[#allocation2 + $0xb8] sm:$0xe0] %v1064
      %1081 = vrot.lane.b32.xlu0 %v233, 111
      %v1082 = vpop.permute.xlu0 %1081
      %1083 = vrot.lane.b32.xlu0 %v241, 111
      %v1084 = vpop.permute.xlu0 %1083
      %1085 = vrot.lane.b32.xlu0 %v234, 111
      %v1086 = vpop.permute.xlu0 %1085
      %1087 = vrot.lane.b32.xlu0 %v242, 111
      %v1088 = vpop.permute.xlu0 %1087
      %1089 = vrot.lane.b32.xlu0 %v235, 111
      %v1090 = vpop.permute.xlu0 %1089
      %1091 = vrot.lane.b32.xlu0 %v243, 111
      %v1092 = vpop.permute.xlu0 %1091
      %1093 = vrot.lane.b32.xlu0 %v236, 111
      %v1094 = vpop.permute.xlu0 %1093
      %1095 = vrot.lane.b32.xlu0 %v244, 111
      %v1096 = vpop.permute.xlu0 %1095
      %vm1097 = vcmp.lt.s32.totalorder %v266, 111
      %v1098 = vsel %vm1097, %v1094, %v1096
      %v1099 = vsel %vm1097, %v1092, %v1094
      %v1100 = vsel %vm1097, %v1090, %v1092
      %v1101 = vsel %vm1097, %v1088, %v1090
      %v1102 = vsel %vm1097, %v1086, %v1088
      %v1103 = vsel %vm1097, %v1084, %v1086
      %v1104 = vsel %vm1097, %v1082, %v1084
      %v1105 = vsel %vm1097, %v1096, %v1082
      %s1106 = scalar_lea.vmem %s1, 64
      %v1107 = vld [vmem:[%s1106] ss:$8 sm:$0xf]
      %v1108 = vld [vmem:[%s1106] ss:$8 sm:$0xf0]
      %v1109 = vor.u32 %v1107, %v1108
      %v1111 = vlaneseq
      %v1112 = vshrl.u32 %v1111, 7
      %v1113 = vsub.s32 0, %v1112
      %v1114 = vrot.slane %v1109, %v1113
      %v1115 = vlaneseq
      %v1116 = vshrl.u32 %v1115, 7
      %v1117 = vsub.s32 1, %v1116
      %v1118 = vrot.slane %v1109, %v1117
      %v1119 = vlaneseq
      %v1120 = vshrl.u32 %v1119, 7
      %v1121 = vsub.s32 2, %v1120
      %v1122 = vrot.slane %v1109, %v1121
      %v1123 = vlaneseq
      %v1124 = vshrl.u32 %v1123, 7
      %v1125 = vsub.s32 3, %v1124
      %v1126 = vrot.slane %v1109, %v1125
      %v1127 = vlaneseq
      %v1128 = vshrl.u32 %v1127, 7
      %v1129 = vsub.s32 4, %v1128
      %v1130 = vrot.slane %v1109, %v1129
      %v1131 = vlaneseq
      %v1132 = vshrl.u32 %v1131, 7
      %v1133 = vsub.s32 5, %v1132
      %v1134 = vrot.slane %v1109, %v1133
      %v1135 = vlaneseq
      %v1136 = vshrl.u32 %v1135, 7
      %v1137 = vsub.s32 6, %v1136
      %v1138 = vrot.slane %v1109, %v1137
      %v1139 = vlaneseq
      %v1140 = vshrl.u32 %v1139, 7
      %v1141 = vsub.s32 7, %v1140
      %v1142 = vrot.slane %v1109, %v1141
      %v1151 = vmul.f32 %v1104, %v1114
      %v1152 = vmul.f32 %v1103, %v1118
      %v1153 = vmul.f32 %v1102, %v1122
      %v1154 = vmul.f32 %v1101, %v1126
      %v1155 = vmul.f32 %v1100, %v1130
      %v1156 = vmul.f32 %v1099, %v1134
      %v1157 = vmul.f32 %v1098, %v1138
      %v1158 = vmul.f32 %v1105, %v1142
      %1159 = vst [vmem:[#allocation2 + $0xc0] sm:$0x7] %v1151
      %1160 = vst [vmem:[#allocation2 + $0xc8] sm:$0x7] %v1152
      %1161 = vst [vmem:[#allocation2 + $0xd0] sm:$0x7] %v1153
      %1162 = vst [vmem:[#allocation2 + $0xd8] sm:$0x7] %v1154
      %1163 = vst [vmem:[#allocation2 + $0xe0] sm:$0x7] %v1155
      %1164 = vst [vmem:[#allocation2 + $0xe8] sm:$0x7] %v1156
      %1165 = vst [vmem:[#allocation2 + $0xf0] sm:$0x7] %v1157
      %1166 = vst [vmem:[#allocation2 + $0xf8] sm:$0x7] %v1158
      %v1167 = vld [vmem:[#allocation2] sm:$0xff]
      %v1168 = vld [vmem:[#allocation2 + $0x8] sm:$0xff]
      %v1169 = vld [vmem:[#allocation2 + $0x10] sm:$0xff]
      %v1170 = vld [vmem:[#allocation2 + $0x18] sm:$0xff]
      %v1171 = vld [vmem:[#allocation2 + $0x20] sm:$0xff]
      %v1172 = vld [vmem:[#allocation2 + $0x28] sm:$0xff]
      %v1173 = vld [vmem:[#allocation2 + $0x30] sm:$0xff]
      %v1174 = vld [vmem:[#allocation2 + $0x38] sm:$0xff]
      %v1175 = vld [vmem:[#allocation2 + $0x40] sm:$0xff]
      %v1176 = vld [vmem:[#allocation2 + $0x48] sm:$0xff]
      %v1177 = vld [vmem:[#allocation2 + $0x50] sm:$0xff]
      %v1178 = vld [vmem:[#allocation2 + $0x58] sm:$0xff]
      %v1179 = vld [vmem:[#allocation2 + $0x60] sm:$0xff]
      %v1180 = vld [vmem:[#allocation2 + $0x68] sm:$0xff]
      %v1181 = vld [vmem:[#allocation2 + $0x70] sm:$0xff]
      %v1182 = vld [vmem:[#allocation2 + $0x78] sm:$0xff]
      %v1183 = vld [vmem:[#allocation2 + $0x80] sm:$0xff]
      %v1184 = vld [vmem:[#allocation2 + $0x88] sm:$0xff]
      %v1185 = vld [vmem:[#allocation2 + $0x90] sm:$0xff]
      %v1186 = vld [vmem:[#allocation2 + $0x98] sm:$0xff]
      %v1187 = vld [vmem:[#allocation2 + $0xa0] sm:$0xff]
      %v1188 = vld [vmem:[#allocation2 + $0xa8] sm:$0xff]
      %v1189 = vld [vmem:[#allocation2 + $0xb0] sm:$0xff]
      %v1190 = vld [vmem:[#allocation2 + $0xb8] sm:$0xff]
      %v1191 = vld [vmem:[#allocation2 + $0xc0] sm:$0xf]
      %v1192 = vld [vmem:[#allocation2 + $0xc8] sm:$0xf]
      %v1193 = vld [vmem:[#allocation2 + $0xd0] sm:$0xf]
      %v1194 = vld [vmem:[#allocation2 + $0xd8] sm:$0xf]
      %v1195 = vld [vmem:[#allocation2 + $0xe0] sm:$0xf]
      %v1196 = vld [vmem:[#allocation2 + $0xe8] sm:$0xf]
      %v1197 = vld [vmem:[#allocation2 + $0xf0] sm:$0xf]
      %v1198 = vld [vmem:[#allocation2 + $0xf8] sm:$0xf]
      %vm1199 = vcmask 228352
      %v1201 = vsel %vm1199, %v227, 0
      %vm1203 = vcmask 1043456
      %v1205 = vsel %vm1203, %v1191, 0
      %v1208 = vsel %vm1203, %v1192, 0
      %v1211 = vsel %vm1203, %v1193, 0
      %v1214 = vsel %vm1203, %v1194, 0
      %v1217 = vsel %vm1203, %v1195, 0
      %v1220 = vsel %vm1203, %v1196, 0
      %v1223 = vsel %vm1203, %v1197, 0
      %v1226 = vsel %vm1203, %v1198, 0
      %1228 = vmatprep.subr.mxu0 0.0
      %1229 = vmatpush1.msra.mxu0 0.0
      %1230 = vmatprep.subr.mxu0 0.0
      %1231 = vmatpush1.msra.mxu0 0.0
      %1232 = vmatprep.subr.mxu0 0.0
      %1233 = vmatpush1.msra.mxu0 0.0
      %1234 = vmatprep.subr.mxu0 0.0
      %1235 = vmatpush1.msra.mxu0 0.0
      %1236 = vmatprep.subr.mxu0 0.0
      %1237 = vmatpush1.msra.mxu0 0.0
      %1238 = vmatprep.subr.mxu0 0.0
      %1239 = vmatpush1.msra.mxu0 0.0
      %1240 = vmatprep.subr.mxu0 0.0
      %1241 = vmatpush1.msra.mxu0 0.0
      %1242 = vmatprep.subr.mxu0 0.0
      %1243 = vmatpush1.msra.mxu0 0.0
      %1244 = vmatprep.subr.mxu0 0.0
      %1245 = vmatpush1.msra.mxu0 0.0
      %1246 = vmatprep.subr.mxu0 0.0
      %1247 = vmatpush1.msra.mxu0 0.0
      %1248 = vmatprep.subr.mxu0 0.0
      %1249 = vmatpush1.msra.mxu0 0.0
      %1250 = vmatprep.subr.mxu0 0.0
      %1251 = vmatpush1.msra.mxu0 0.0
      %1252 = vmatprep.subr.mxu0 %v1208
      %1253 = vmatpush1.msra.mxu0 %v1205
      %1254 = vmatprep.subr.mxu0 %v1184
      %1255 = vmatpush1.msra.mxu0 %v1183
      %1256 = vmatprep.subr.mxu0 %v1176
      %1257 = vmatpush1.msra.mxu0 %v1175
      %1258 = vmatprep.subr.mxu0 %v1168
      %1259 = vmatpush1.msra.mxu0 %v1167
      %1260 = vmatprep.subr.mxu0 0.0
      %1261 = vmatpush2.msra.mxu0 0.0
      %1262 = vmatprep.subr.mxu0 0.0
      %1263 = vmatpush2.msra.mxu0 0.0
      %1264 = vmatprep.subr.mxu0 0.0
      %1265 = vmatpush2.msra.mxu0 0.0
      %1266 = vmatprep.subr.mxu0 0.0
      %1267 = vmatpush2.msra.mxu0 0.0
      %1268 = vmatprep.subr.mxu0 0.0
      %1269 = vmatpush2.msra.mxu0 0.0
      %1270 = vmatprep.subr.mxu0 0.0
      %1271 = vmatpush2.msra.mxu0 0.0
      %1272 = vmatprep.subr.mxu0 0.0
      %1273 = vmatpush2.msra.mxu0 0.0
      %1274 = vmatprep.subr.mxu0 0.0
      %1275 = vmatpush2.msra.mxu0 0.0
      %1276 = vmatprep.subr.mxu0 0.0
      %1277 = vmatpush2.msra.mxu0 0.0
      %1278 = vmatprep.subr.mxu0 0.0
      %1279 = vmatpush2.msra.mxu0 0.0
      %1280 = vmatprep.subr.mxu0 0.0
      %1281 = vmatpush2.msra.mxu0 0.0
      %1282 = vmatprep.subr.mxu0 0.0
      %1283 = vmatpush2.msra.mxu0 0.0
      %1284 = vmatprep.subr.mxu0 0.0
      %1285 = vmatpush2.msra.mxu0 0.0
      %1286 = vmatprep.subr.mxu0 0.0
      %1287 = vmatpush2.msra.mxu0 0.0
      %1288 = vmatprep.subr.mxu0 0.0
      %1289 = vmatpush2.msra.mxu0 0.0
      %1290 = vmatprep.subr.mxu0 0.0
      %1291 = vmatpush2.msra.mxu0 0.0
      %1292 = vmatprep.mubr.f32.mxu0 0.0
      %1293 = vmatmul.mubr.f32.gmra.mxu0 %v1201
      %v1294 = vpop.f32.mrf.mxu0
      %v1295 = vadd.f32 0.0, %v1294
      %v1296 = vpop.f32.mrf.mxu0
      %v1297 = vadd.f32 0.0, %v1296
      %1298 = vdwg.mxu0
      %1299 = vmatprep.subr.mxu0 0.0
      %1300 = vmatpush1.msra.mxu0 0.0
      %1301 = vmatprep.subr.mxu0 0.0
      %1302 = vmatpush1.msra.mxu0 0.0
      %1303 = vmatprep.subr.mxu0 0.0
      %1304 = vmatpush1.msra.mxu0 0.0
      %1305 = vmatprep.subr.mxu0 0.0
      %1306 = vmatpush1.msra.mxu0 0.0
      %1307 = vmatprep.subr.mxu0 0.0
      %1308 = vmatpush1.msra.mxu0 0.0
      %1309 = vmatprep.subr.mxu0 0.0
      %1310 = vmatpush1.msra.mxu0 0.0
      %1311 = vmatprep.subr.mxu0 0.0
      %1312 = vmatpush1.msra.mxu0 0.0
      %1313 = vmatprep.subr.mxu0 0.0
      %1314 = vmatpush1.msra.mxu0 0.0
      %1315 = vmatprep.subr.mxu0 0.0
      %1316 = vmatpush1.msra.mxu0 0.0
      %1317 = vmatprep.subr.mxu0 0.0
      %1318 = vmatpush1.msra.mxu0 0.0
      %1319 = vmatprep.subr.mxu0 0.0
      %1320 = vmatpush1.msra.mxu0 0.0
      %1321 = vmatprep.subr.mxu0 0.0
      %1322 = vmatpush1.msra.mxu0 0.0
      %1323 = vmatprep.subr.mxu0 %v1214
      %1324 = vmatpush1.msra.mxu0 %v1211
      %1325 = vmatprep.subr.mxu0 %v1186
      %1326 = vmatpush1.msra.mxu0 %v1185
      %1327 = vmatprep.subr.mxu0 %v1178
      %1328 = vmatpush1.msra.mxu0 %v1177
      %1329 = vmatprep.subr.mxu0 %v1170
      %1330 = vmatpush1.msra.mxu0 %v1169
      %1331 = vmatprep.subr.mxu0 0.0
      %1332 = vmatpush2.msra.mxu0 0.0
      %1333 = vmatprep.subr.mxu0 0.0
      %1334 = vmatpush2.msra.mxu0 0.0
      %1335 = vmatprep.subr.mxu0 0.0
      %1336 = vmatpush2.msra.mxu0 0.0
      %1337 = vmatprep.subr.mxu0 0.0
      %1338 = vmatpush2.msra.mxu0 0.0
      %1339 = vmatprep.subr.mxu0 0.0
      %1340 = vmatpush2.msra.mxu0 0.0
      %1341 = vmatprep.subr.mxu0 0.0
      %1342 = vmatpush2.msra.mxu0 0.0
      %1343 = vmatprep.subr.mxu0 0.0
      %1344 = vmatpush2.msra.mxu0 0.0
      %1345 = vmatprep.subr.mxu0 0.0
      %1346 = vmatpush2.msra.mxu0 0.0
      %1347 = vmatprep.subr.mxu0 0.0
      %1348 = vmatpush2.msra.mxu0 0.0
      %1349 = vmatprep.subr.mxu0 0.0
      %1350 = vmatpush2.msra.mxu0 0.0
      %1351 = vmatprep.subr.mxu0 0.0
      %1352 = vmatpush2.msra.mxu0 0.0
      %1353 = vmatprep.subr.mxu0 0.0
      %1354 = vmatpush2.msra.mxu0 0.0
      %1355 = vmatprep.subr.mxu0 0.0
      %1356 = vmatpush2.msra.mxu0 0.0
      %1357 = vmatprep.subr.mxu0 0.0
      %1358 = vmatpush2.msra.mxu0 0.0
      %1359 = vmatprep.subr.mxu0 0.0
      %1360 = vmatpush2.msra.mxu0 0.0
      %1361 = vmatprep.subr.mxu0 0.0
      %1362 = vmatpush2.msra.mxu0 0.0
      %1363 = vmatprep.mubr.f32.mxu0 0.0
      %1364 = vmatmul.mubr.f32.gmra.mxu0 %v1201
      %v1365 = vpop.f32.mrf.mxu0
      %v1366 = vadd.f32 0.0, %v1365
      %v1367 = vpop.f32.mrf.mxu0
      %v1368 = vadd.f32 0.0, %v1367
      %1369 = vdwg.mxu0
      %1370 = vmatprep.subr.mxu0 0.0
      %1371 = vmatpush1.msra.mxu0 0.0
      %1372 = vmatprep.subr.mxu0 0.0
      %1373 = vmatpush1.msra.mxu0 0.0
      %1374 = vmatprep.subr.mxu0 0.0
      %1375 = vmatpush1.msra.mxu0 0.0
      %1376 = vmatprep.subr.mxu0 0.0
      %1377 = vmatpush1.msra.mxu0 0.0
      %1378 = vmatprep.subr.mxu0 0.0
      %1379 = vmatpush1.msra.mxu0 0.0
      %1380 = vmatprep.subr.mxu0 0.0
      %1381 = vmatpush1.msra.mxu0 0.0
      %1382 = vmatprep.subr.mxu0 0.0
      %1383 = vmatpush1.msra.mxu0 0.0
      %1384 = vmatprep.subr.mxu0 0.0
      %1385 = vmatpush1.msra.mxu0 0.0
      %1386 = vmatprep.subr.mxu0 0.0
      %1387 = vmatpush1.msra.mxu0 0.0
      %1388 = vmatprep.subr.mxu0 0.0
      %1389 = vmatpush1.msra.mxu0 0.0
      %1390 = vmatprep.subr.mxu0 0.0
      %1391 = vmatpush1.msra.mxu0 0.0
      %1392 = vmatprep.subr.mxu0 0.0
      %1393 = vmatpush1.msra.mxu0 0.0
      %1394 = vmatprep.subr.mxu0 %v1220
      %1395 = vmatpush1.msra.mxu0 %v1217
      %1396 = vmatprep.subr.mxu0 %v1188
      %1397 = vmatpush1.msra.mxu0 %v1187
      %1398 = vmatprep.subr.mxu0 %v1180
      %1399 = vmatpush1.msra.mxu0 %v1179
      %1400 = vmatprep.subr.mxu0 %v1172
      %1401 = vmatpush1.msra.mxu0 %v1171
      %1402 = vmatprep.subr.mxu0 0.0
      %1403 = vmatpush2.msra.mxu0 0.0
      %1404 = vmatprep.subr.mxu0 0.0
      %1405 = vmatpush2.msra.mxu0 0.0
      %1406 = vmatprep.subr.mxu0 0.0
      %1407 = vmatpush2.msra.mxu0 0.0
      %1408 = vmatprep.subr.mxu0 0.0
      %1409 = vmatpush2.msra.mxu0 0.0
      %1410 = vmatprep.subr.mxu0 0.0
      %1411 = vmatpush2.msra.mxu0 0.0
      %1412 = vmatprep.subr.mxu0 0.0
      %1413 = vmatpush2.msra.mxu0 0.0
      %1414 = vmatprep.subr.mxu0 0.0
      %1415 = vmatpush2.msra.mxu0 0.0
      %1416 = vmatprep.subr.mxu0 0.0
      %1417 = vmatpush2.msra.mxu0 0.0
      %1418 = vmatprep.subr.mxu0 0.0
      %1419 = vmatpush2.msra.mxu0 0.0
      %1420 = vmatprep.subr.mxu0 0.0
      %1421 = vmatpush2.msra.mxu0 0.0
      %1422 = vmatprep.subr.mxu0 0.0
      %1423 = vmatpush2.msra.mxu0 0.0
      %1424 = vmatprep.subr.mxu0 0.0
      %1425 = vmatpush2.msra.mxu0 0.0
      %1426 = vmatprep.subr.mxu0 0.0
      %1427 = vmatpush2.msra.mxu0 0.0
      %1428 = vmatprep.subr.mxu0 0.0
      %1429 = vmatpush2.msra.mxu0 0.0
      %1430 = vmatprep.subr.mxu0 0.0
      %1431 = vmatpush2.msra.mxu0 0.0
      %1432 = vmatprep.subr.mxu0 0.0
      %1433 = vmatpush2.msra.mxu0 0.0
      %1434 = vmatprep.mubr.f32.mxu0 0.0
      %1435 = vmatmul.mubr.f32.gmra.mxu0 %v1201
      %v1436 = vpop.f32.mrf.mxu0
      %v1437 = vadd.f32 0.0, %v1436
      %v1438 = vpop.f32.mrf.mxu0
      %v1439 = vadd.f32 0.0, %v1438
      %1440 = vdwg.mxu0
      %1441 = vmatprep.subr.mxu0 0.0
      %1442 = vmatpush1.msra.mxu0 0.0
      %1443 = vmatprep.subr.mxu0 0.0
      %1444 = vmatpush1.msra.mxu0 0.0
      %1445 = vmatprep.subr.mxu0 0.0
      %1446 = vmatpush1.msra.mxu0 0.0
      %1447 = vmatprep.subr.mxu0 0.0
      %1448 = vmatpush1.msra.mxu0 0.0
      %1449 = vmatprep.subr.mxu0 0.0
      %1450 = vmatpush1.msra.mxu0 0.0
      %1451 = vmatprep.subr.mxu0 0.0
      %1452 = vmatpush1.msra.mxu0 0.0
      %1453 = vmatprep.subr.mxu0 0.0
      %1454 = vmatpush1.msra.mxu0 0.0
      %1455 = vmatprep.subr.mxu0 0.0
      %1456 = vmatpush1.msra.mxu0 0.0
      %1457 = vmatprep.subr.mxu0 0.0
      %1458 = vmatpush1.msra.mxu0 0.0
      %1459 = vmatprep.subr.mxu0 0.0
      %1460 = vmatpush1.msra.mxu0 0.0
      %1461 = vmatprep.subr.mxu0 0.0
      %1462 = vmatpush1.msra.mxu0 0.0
      %1463 = vmatprep.subr.mxu0 0.0
      %1464 = vmatpush1.msra.mxu0 0.0
      %1465 = vmatprep.subr.mxu0 %v1226
      %1466 = vmatpush1.msra.mxu0 %v1223
      %1467 = vmatprep.subr.mxu0 %v1190
      %1468 = vmatpush1.msra.mxu0 %v1189
      %1469 = vmatprep.subr.mxu0 %v1182
      %1470 = vmatpush1.msra.mxu0 %v1181
      %1471 = vmatprep.subr.mxu0 %v1174
      %1472 = vmatpush1.msra.mxu0 %v1173
      %1473 = vmatprep.subr.mxu0 0.0
      %1474 = vmatpush2.msra.mxu0 0.0
      %1475 = vmatprep.subr.mxu0 0.0
      %1476 = vmatpush2.msra.mxu0 0.0
      %1477 = vmatprep.subr.mxu0 0.0
      %1478 = vmatpush2.msra.mxu0 0.0
      %1479 = vmatprep.subr.mxu0 0.0
      %1480 = vmatpush2.msra.mxu0 0.0
      %1481 = vmatprep.subr.mxu0 0.0
      %1482 = vmatpush2.msra.mxu0 0.0
      %1483 = vmatprep.subr.mxu0 0.0
      %1484 = vmatpush2.msra.mxu0 0.0
      %1485 = vmatprep.subr.mxu0 0.0
      %1486 = vmatpush2.msra.mxu0 0.0
      %1487 = vmatprep.subr.mxu0 0.0
      %1488 = vmatpush2.msra.mxu0 0.0
      %1489 = vmatprep.subr.mxu0 0.0
      %1490 = vmatpush2.msra.mxu0 0.0
      %1491 = vmatprep.subr.mxu0 0.0
      %1492 = vmatpush2.msra.mxu0 0.0
      %1493 = vmatprep.subr.mxu0 0.0
      %1494 = vmatpush2.msra.mxu0 0.0
      %1495 = vmatprep.subr.mxu0 0.0
      %1496 = vmatpush2.msra.mxu0 0.0
      %1497 = vmatprep.subr.mxu0 0.0
      %1498 = vmatpush2.msra.mxu0 0.0
      %1499 = vmatprep.subr.mxu0 0.0
      %1500 = vmatpush2.msra.mxu0 0.0
      %1501 = vmatprep.subr.mxu0 0.0
      %1502 = vmatpush2.msra.mxu0 0.0
      %1503 = vmatprep.subr.mxu0 0.0
      %1504 = vmatpush2.msra.mxu0 0.0
      %1505 = vmatprep.mubr.f32.mxu0 0.0
      %1506 = vmatmul.mubr.f32.gmra.mxu0 %v1201
      %v1507 = vpop.f32.mrf.mxu0
      %v1508 = vadd.f32 0.0, %v1507
      %v1509 = vpop.f32.mrf.mxu0
      %v1510 = vadd.f32 0.0, %v1509
      %1511 = vdwg.mxu0
      %v1512 = vmax.f32 %v1295, 0.0
      %v1513 = vmax.f32 %v1297, 0.0
      %v1514 = vmax.f32 %v1366, 0.0
      %v1515 = vmax.f32 %v1368, 0.0
      %v1516 = vmax.f32 %v1437, 0.0
      %v1517 = vmax.f32 %v1439, 0.0
      %v1518 = vmax.f32 %v1508, 0.0
      %v1519 = vmax.f32 %v1510, 0.0
      %1520 = vst [vmem:[#allocation3] sm:$0xff] %v1512
      %1521 = vst [vmem:[#allocation3 + $0x8] sm:$0xff] %v1513
      %1522 = vst [vmem:[#allocation3 + $0x10] sm:$0xff] %v1514
      %1523 = vst [vmem:[#allocation3 + $0x18] sm:$0xff] %v1515
      %1524 = vst [vmem:[#allocation3 + $0x20] sm:$0xff] %v1516
      %1525 = vst [vmem:[#allocation3 + $0x28] sm:$0xff] %v1517
      %1526 = vst [vmem:[#allocation3 + $0x30] sm:$0xff] %v1518
      %1527 = vst [vmem:[#allocation3 + $0x38] sm:$0xff] %v1519
      %v1528 = vld [vmem:[#allocation3] sm:$0xff]
      %v1529 = vld [vmem:[#allocation3 + $0x8] sm:$0xff]
      %v1530 = vld [vmem:[#allocation3 + $0x10] sm:$0xff]
      %v1531 = vld [vmem:[#allocation3 + $0x18] sm:$0xff]
      %v1532 = vld [vmem:[#allocation3 + $0x20] sm:$0xff]
      %v1533 = vld [vmem:[#allocation3 + $0x28] sm:$0xff]
      %v1534 = vld [vmem:[#allocation3 + $0x30] sm:$0xff]
      %v1535 = vld [vmem:[#allocation3 + $0x38] sm:$0xff]
      %1536 = vrot.lane.b32.xlu0 %v1528, 17
      %v1537 = vpop.permute.xlu0 %1536
      %1538 = vrot.lane.b32.xlu0 %v1529, 17
      %v1539 = vpop.permute.xlu0 %1538
      %1540 = vrot.lane.b32.xlu0 %v1530, 17
      %v1541 = vpop.permute.xlu0 %1540
      %1542 = vrot.lane.b32.xlu0 %v1531, 17
      %v1543 = vpop.permute.xlu0 %1542
      %1544 = vrot.lane.b32.xlu0 %v1532, 17
      %v1545 = vpop.permute.xlu0 %1544
      %1546 = vrot.lane.b32.xlu0 %v1533, 17
      %v1547 = vpop.permute.xlu0 %1546
      %1548 = vrot.lane.b32.xlu0 %v1534, 17
      %v1549 = vpop.permute.xlu0 %1548
      %1550 = vrot.lane.b32.xlu0 %v1535, 17
      %v1551 = vpop.permute.xlu0 %1550
      %v1552 = vsel %vm267, %v1549, %v1551
      %v1553 = vsel %vm267, %v1547, %v1549
      %v1554 = vsel %vm267, %v1545, %v1547
      %v1555 = vsel %vm267, %v1543, %v1545
      %v1556 = vsel %vm267, %v1541, %v1543
      %v1557 = vsel %vm267, %v1539, %v1541
      %v1558 = vsel %vm267, %v1537, %v1539
      %v1559 = vsel %vm267, %v1551, %v1537
      %1561 = vset.pattern.permute.xlu0 0
      %1562 = vperm.xlu0 %1561, %v228
      %v1563 = vpop.permute.xlu0 %1562
      %v1565 = vmul.f32 %v1559, %v1563
      %v1566 = vmul.f32 %v1558, %v1563
      %v1567 = vmul.f32 %v1557, %v1563
      %v1568 = vmul.f32 %v1556, %v1563
      %v1569 = vmul.f32 %v1555, %v1563
      %v1570 = vmul.f32 %v1554, %v1563
      %v1571 = vmul.f32 %v1553, %v1563
      %v1572 = vmul.f32 %v1552, %v1563
      %v1573 = vrot.slane %v1565, 4
      %v1574 = vadd.f32 %v1565, %v1573
      %v1575 = vrot.slane %v1574, 2
      %v1576 = vadd.f32 %v1574, %v1575
      %v1577 = vrot.slane %v1576, 1
      %v1578 = vadd.f32 %v1576, %v1577
      %v1579 = vrot.slane %v1566, 4
      %v1580 = vadd.f32 %v1566, %v1579
      %v1581 = vrot.slane %v1580, 2
      %v1582 = vadd.f32 %v1580, %v1581
      %v1583 = vrot.slane %v1582, 1
      %v1584 = vadd.f32 %v1582, %v1583
      %v1585 = vrot.slane %v1567, 4
      %v1586 = vadd.f32 %v1567, %v1585
      %v1587 = vrot.slane %v1586, 2
      %v1588 = vadd.f32 %v1586, %v1587
      %v1589 = vrot.slane %v1588, 1
      %v1590 = vadd.f32 %v1588, %v1589
      %v1591 = vrot.slane %v1568, 4
      %v1592 = vadd.f32 %v1568, %v1591
      %v1593 = vrot.slane %v1592, 2
      %v1594 = vadd.f32 %v1592, %v1593
      %v1595 = vrot.slane %v1594, 1
      %v1596 = vadd.f32 %v1594, %v1595
      %v1597 = vrot.slane %v1569, 4
      %v1598 = vadd.f32 %v1569, %v1597
      %v1599 = vrot.slane %v1598, 2
      %v1600 = vadd.f32 %v1598, %v1599
      %v1601 = vrot.slane %v1600, 1
      %v1602 = vadd.f32 %v1600, %v1601
      %v1603 = vrot.slane %v1570, 4
      %v1604 = vadd.f32 %v1570, %v1603
      %v1605 = vrot.slane %v1604, 2
      %v1606 = vadd.f32 %v1604, %v1605
      %v1607 = vrot.slane %v1606, 1
      %v1608 = vadd.f32 %v1606, %v1607
      %v1609 = vrot.slane %v1571, 4
      %v1610 = vadd.f32 %v1571, %v1609
      %v1611 = vrot.slane %v1610, 2
      %v1612 = vadd.f32 %v1610, %v1611
      %v1613 = vrot.slane %v1612, 1
      %v1614 = vadd.f32 %v1612, %v1613
      %v1615 = vrot.slane %v1572, 4
      %v1616 = vadd.f32 %v1572, %v1615
      %v1617 = vrot.slane %v1616, 2
      %v1618 = vadd.f32 %v1616, %v1617
      %v1619 = vrot.slane %v1618, 1
      %v1620 = vadd.f32 %v1618, %v1619
      %v1621 = vld [vmem:[%s1] ss:$8 sm:$0xf]
      %v1622 = vld [vmem:[%s1] ss:$8 sm:$0xf0]
      %v1623 = vor.u32 %v1621, %v1622
      %v1632 = vcombine.low %v1578, %v1584
      %v1633 = vcombine.low %v1590, %v1596
      %v1634 = vcombine.low %v1602, %v1608
      %v1635 = vcombine.low %v1614, %v1620
      %v1637 = vunpack.c.l.s4 1966171168
      %v1638 = vunpack.c.0.s8 %v1637
      %v1639 = vlaneseq
      %v1640 = vshrl.u32 %v1639, 7
      %v1641 = vsub.s32 %v1638, %v1640
      %v1642 = vrot.slane %v1632, %v1641
      %v1644 = vunpack.c.l.s4 1966171168
      %v1645 = vunpack.c.0.s8 %v1644
      %v1646 = vlaneseq
      %v1647 = vshrl.u32 %v1646, 7
      %v1648 = vsub.s32 %v1645, %v1647
      %v1649 = vrot.slane %v1633, %v1648
      %v1651 = vunpack.c.l.s4 1966171168
      %v1652 = vunpack.c.0.s8 %v1651
      %v1653 = vlaneseq
      %v1654 = vshrl.u32 %v1653, 7
      %v1655 = vsub.s32 %v1652, %v1654
      %v1656 = vrot.slane %v1634, %v1655
      %v1658 = vunpack.c.l.s4 1966171168
      %v1659 = vunpack.c.0.s8 %v1658
      %v1660 = vlaneseq
      %v1661 = vshrl.u32 %v1660, 7
      %v1662 = vsub.s32 %v1659, %v1661
      %v1663 = vrot.slane %v1635, %v1662
      %v1664 = vcombine.low %v1642, %v1649
      %v1665 = vcombine.low %v1656, %v1663
      %v1667 = vunpack.c.l.s4 1966171168
      %v1668 = vunpack.c.0.s8 %v1667
      %v1669 = vlaneseq
      %v1670 = vshrl.u32 %v1669, 7
      %v1671 = vsub.s32 %v1668, %v1670
      %v1672 = vrot.slane %v1664, %v1671
      %v1674 = vunpack.c.l.s4 1966171168
      %v1675 = vunpack.c.0.s8 %v1674
      %v1676 = vlaneseq
      %v1677 = vshrl.u32 %v1676, 7
      %v1678 = vsub.s32 %v1675, %v1677
      %v1679 = vrot.slane %v1665, %v1678
      %v1680 = vcombine.low %v1672, %v1679
      %v1682 = vmul.f32 %v1623, %v1680
      %v1683 = vadd.f32 %v1682, 0.0
      %1684 = vrot.lane.b32.xlu0 %v1528, 16
      %v1685 = vpop.permute.xlu0 %1684
      %1686 = vrot.lane.b32.xlu0 %v1529, 16
      %v1687 = vpop.permute.xlu0 %1686
      %1688 = vrot.lane.b32.xlu0 %v1530, 16
      %v1689 = vpop.permute.xlu0 %1688
      %1690 = vrot.lane.b32.xlu0 %v1531, 16
      %v1691 = vpop.permute.xlu0 %1690
      %1692 = vrot.lane.b32.xlu0 %v1532, 16
      %v1693 = vpop.permute.xlu0 %1692
      %1694 = vrot.lane.b32.xlu0 %v1533, 16
      %v1695 = vpop.permute.xlu0 %1694
      %1696 = vrot.lane.b32.xlu0 %v1534, 16
      %v1697 = vpop.permute.xlu0 %1696
      %1698 = vrot.lane.b32.xlu0 %v1535, 16
      %v1699 = vpop.permute.xlu0 %1698
      %v1700 = vsel %vm352, %v1697, %v1699
      %v1701 = vsel %vm352, %v1695, %v1697
      %v1702 = vsel %vm352, %v1693, %v1695
      %v1703 = vsel %vm352, %v1691, %v1693
      %v1704 = vsel %vm352, %v1689, %v1691
      %v1705 = vsel %vm352, %v1687, %v1689
      %v1706 = vsel %vm352, %v1685, %v1687
      %v1707 = vsel %vm352, %v1699, %v1685
      %1708 = vset.pattern.permute.xlu0 1
      %1709 = vperm.xlu0 %1708, %v228
      %v1710 = vpop.permute.xlu0 %1709
      %v1712 = vmul.f32 %v1707, %v1710
      %v1713 = vmul.f32 %v1706, %v1710
      %v1714 = vmul.f32 %v1705, %v1710
      %v1715 = vmul.f32 %v1704, %v1710
      %v1716 = vmul.f32 %v1703, %v1710
      %v1717 = vmul.f32 %v1702, %v1710
      %v1718 = vmul.f32 %v1701, %v1710
      %v1719 = vmul.f32 %v1700, %v1710
      %v1720 = vrot.slane %v1712, 4
      %v1721 = vadd.f32 %v1712, %v1720
      %v1722 = vrot.slane %v1721, 2
      %v1723 = vadd.f32 %v1721, %v1722
      %v1724 = vrot.slane %v1723, 1
      %v1725 = vadd.f32 %v1723, %v1724
      %v1726 = vrot.slane %v1713, 4
      %v1727 = vadd.f32 %v1713, %v1726
      %v1728 = vrot.slane %v1727, 2
      %v1729 = vadd.f32 %v1727, %v1728
      %v1730 = vrot.slane %v1729, 1
      %v1731 = vadd.f32 %v1729, %v1730
      %v1732 = vrot.slane %v1714, 4
      %v1733 = vadd.f32 %v1714, %v1732
      %v1734 = vrot.slane %v1733, 2
      %v1735 = vadd.f32 %v1733, %v1734
      %v1736 = vrot.slane %v1735, 1
      %v1737 = vadd.f32 %v1735, %v1736
      %v1738 = vrot.slane %v1715, 4
      %v1739 = vadd.f32 %v1715, %v1738
      %v1740 = vrot.slane %v1739, 2
      %v1741 = vadd.f32 %v1739, %v1740
      %v1742 = vrot.slane %v1741, 1
      %v1743 = vadd.f32 %v1741, %v1742
      %v1744 = vrot.slane %v1716, 4
      %v1745 = vadd.f32 %v1716, %v1744
      %v1746 = vrot.slane %v1745, 2
      %v1747 = vadd.f32 %v1745, %v1746
      %v1748 = vrot.slane %v1747, 1
      %v1749 = vadd.f32 %v1747, %v1748
      %v1750 = vrot.slane %v1717, 4
      %v1751 = vadd.f32 %v1717, %v1750
      %v1752 = vrot.slane %v1751, 2
      %v1753 = vadd.f32 %v1751, %v1752
      %v1754 = vrot.slane %v1753, 1
      %v1755 = vadd.f32 %v1753, %v1754
      %v1756 = vrot.slane %v1718, 4
      %v1757 = vadd.f32 %v1718, %v1756
      %v1758 = vrot.slane %v1757, 2
      %v1759 = vadd.f32 %v1757, %v1758
      %v1760 = vrot.slane %v1759, 1
      %v1761 = vadd.f32 %v1759, %v1760
      %v1762 = vrot.slane %v1719, 4
      %v1763 = vadd.f32 %v1719, %v1762
      %v1764 = vrot.slane %v1763, 2
      %v1765 = vadd.f32 %v1763, %v1764
      %v1766 = vrot.slane %v1765, 1
      %v1767 = vadd.f32 %v1765, %v1766
      %v1768 = vld [vmem:[%s361] ss:$8 sm:$0xf]
      %v1769 = vld [vmem:[%s361] ss:$8 sm:$0xf0]
      %v1770 = vor.u32 %v1768, %v1769
      %v1779 = vcombine.low %v1725, %v1731
      %v1780 = vcombine.low %v1737, %v1743
      %v1781 = vcombine.low %v1749, %v1755
      %v1782 = vcombine.low %v1761, %v1767
      %v1784 = vunpack.c.l.s4 1966171168
      %v1785 = vunpack.c.0.s8 %v1784
      %v1786 = vlaneseq
      %v1787 = vshrl.u32 %v1786, 7
      %v1788 = vsub.s32 %v1785, %v1787
      %v1789 = vrot.slane %v1779, %v1788
      %v1791 = vunpack.c.l.s4 1966171168
      %v1792 = vunpack.c.0.s8 %v1791
      %v1793 = vlaneseq
      %v1794 = vshrl.u32 %v1793, 7
      %v1795 = vsub.s32 %v1792, %v1794
      %v1796 = vrot.slane %v1780, %v1795
      %v1798 = vunpack.c.l.s4 1966171168
      %v1799 = vunpack.c.0.s8 %v1798
      %v1800 = vlaneseq
      %v1801 = vshrl.u32 %v1800, 7
      %v1802 = vsub.s32 %v1799, %v1801
      %v1803 = vrot.slane %v1781, %v1802
      %v1805 = vunpack.c.l.s4 1966171168
      %v1806 = vunpack.c.0.s8 %v1805
      %v1807 = vlaneseq
      %v1808 = vshrl.u32 %v1807, 7
      %v1809 = vsub.s32 %v1806, %v1808
      %v1810 = vrot.slane %v1782, %v1809
      %v1811 = vcombine.low %v1789, %v1796
      %v1812 = vcombine.low %v1803, %v1810
      %v1814 = vunpack.c.l.s4 1966171168
      %v1815 = vunpack.c.0.s8 %v1814
      %v1816 = vlaneseq
      %v1817 = vshrl.u32 %v1816, 7
      %v1818 = vsub.s32 %v1815, %v1817
      %v1819 = vrot.slane %v1811, %v1818
      %v1821 = vunpack.c.l.s4 1966171168
      %v1822 = vunpack.c.0.s8 %v1821
      %v1823 = vlaneseq
      %v1824 = vshrl.u32 %v1823, 7
      %v1825 = vsub.s32 %v1822, %v1824
      %v1826 = vrot.slane %v1812, %v1825
      %v1827 = vcombine.low %v1819, %v1826
      %v1829 = vmul.f32 %v1770, %v1827
      %v1830 = vadd.f32 %v1683, %v1829
      %1831 = vrot.lane.b32.xlu0 %v1528, 15
      %v1832 = vpop.permute.xlu0 %1831
      %1833 = vrot.lane.b32.xlu0 %v1529, 15
      %v1834 = vpop.permute.xlu0 %1833
      %1835 = vrot.lane.b32.xlu0 %v1530, 15
      %v1836 = vpop.permute.xlu0 %1835
      %1837 = vrot.lane.b32.xlu0 %v1531, 15
      %v1838 = vpop.permute.xlu0 %1837
      %1839 = vrot.lane.b32.xlu0 %v1532, 15
      %v1840 = vpop.permute.xlu0 %1839
      %1841 = vrot.lane.b32.xlu0 %v1533, 15
      %v1842 = vpop.permute.xlu0 %1841
      %1843 = vrot.lane.b32.xlu0 %v1534, 15
      %v1844 = vpop.permute.xlu0 %1843
      %1845 = vrot.lane.b32.xlu0 %v1535, 15
      %v1846 = vpop.permute.xlu0 %1845
      %v1847 = vsel %vm462, %v1844, %v1846
      %v1848 = vsel %vm462, %v1842, %v1844
      %v1849 = vsel %vm462, %v1840, %v1842
      %v1850 = vsel %vm462, %v1838, %v1840
      %v1851 = vsel %vm462, %v1836, %v1838
      %v1852 = vsel %vm462, %v1834, %v1836
      %v1853 = vsel %vm462, %v1832, %v1834
      %v1854 = vsel %vm462, %v1846, %v1832
      %1855 = vset.pattern.permute.xlu0 2
      %1856 = vperm.xlu0 %1855, %v228
      %v1857 = vpop.permute.xlu0 %1856
      %v1859 = vmul.f32 %v1854, %v1857
      %v1860 = vmul.f32 %v1853, %v1857
      %v1861 = vmul.f32 %v1852, %v1857
      %v1862 = vmul.f32 %v1851, %v1857
      %v1863 = vmul.f32 %v1850, %v1857
      %v1864 = vmul.f32 %v1849, %v1857
      %v1865 = vmul.f32 %v1848, %v1857
      %v1866 = vmul.f32 %v1847, %v1857
      %v1867 = vrot.slane %v1859, 4
      %v1868 = vadd.f32 %v1859, %v1867
      %v1869 = vrot.slane %v1868, 2
      %v1870 = vadd.f32 %v1868, %v1869
      %v1871 = vrot.slane %v1870, 1
      %v1872 = vadd.f32 %v1870, %v1871
      %v1873 = vrot.slane %v1860, 4
      %v1874 = vadd.f32 %v1860, %v1873
      %v1875 = vrot.slane %v1874, 2
      %v1876 = vadd.f32 %v1874, %v1875
      %v1877 = vrot.slane %v1876, 1
      %v1878 = vadd.f32 %v1876, %v1877
      %v1879 = vrot.slane %v1861, 4
      %v1880 = vadd.f32 %v1861, %v1879
      %v1881 = vrot.slane %v1880, 2
      %v1882 = vadd.f32 %v1880, %v1881
      %v1883 = vrot.slane %v1882, 1
      %v1884 = vadd.f32 %v1882, %v1883
      %v1885 = vrot.slane %v1862, 4
      %v1886 = vadd.f32 %v1862, %v1885
      %v1887 = vrot.slane %v1886, 2
      %v1888 = vadd.f32 %v1886, %v1887
      %v1889 = vrot.slane %v1888, 1
      %v1890 = vadd.f32 %v1888, %v1889
      %v1891 = vrot.slane %v1863, 4
      %v1892 = vadd.f32 %v1863, %v1891
      %v1893 = vrot.slane %v1892, 2
      %v1894 = vadd.f32 %v1892, %v1893
      %v1895 = vrot.slane %v1894, 1
      %v1896 = vadd.f32 %v1894, %v1895
      %v1897 = vrot.slane %v1864, 4
      %v1898 = vadd.f32 %v1864, %v1897
      %v1899 = vrot.slane %v1898, 2
      %v1900 = vadd.f32 %v1898, %v1899
      %v1901 = vrot.slane %v1900, 1
      %v1902 = vadd.f32 %v1900, %v1901
      %v1903 = vrot.slane %v1865, 4
      %v1904 = vadd.f32 %v1865, %v1903
      %v1905 = vrot.slane %v1904, 2
      %v1906 = vadd.f32 %v1904, %v1905
      %v1907 = vrot.slane %v1906, 1
      %v1908 = vadd.f32 %v1906, %v1907
      %v1909 = vrot.slane %v1866, 4
      %v1910 = vadd.f32 %v1866, %v1909
      %v1911 = vrot.slane %v1910, 2
      %v1912 = vadd.f32 %v1910, %v1911
      %v1913 = vrot.slane %v1912, 1
      %v1914 = vadd.f32 %v1912, %v1913
      %v1915 = vld [vmem:[%s471] ss:$8 sm:$0xf]
      %v1916 = vld [vmem:[%s471] ss:$8 sm:$0xf0]
      %v1917 = vor.u32 %v1915, %v1916
      %v1926 = vcombine.low %v1872, %v1878
      %v1927 = vcombine.low %v1884, %v1890
      %v1928 = vcombine.low %v1896, %v1902
      %v1929 = vcombine.low %v1908, %v1914
      %v1931 = vunpack.c.l.s4 1966171168
      %v1932 = vunpack.c.0.s8 %v1931
      %v1933 = vlaneseq
      %v1934 = vshrl.u32 %v1933, 7
      %v1935 = vsub.s32 %v1932, %v1934
      %v1936 = vrot.slane %v1926, %v1935
      %v1938 = vunpack.c.l.s4 1966171168
      %v1939 = vunpack.c.0.s8 %v1938
      %v1940 = vlaneseq
      %v1941 = vshrl.u32 %v1940, 7
      %v1942 = vsub.s32 %v1939, %v1941
      %v1943 = vrot.slane %v1927, %v1942
      %v1945 = vunpack.c.l.s4 1966171168
      %v1946 = vunpack.c.0.s8 %v1945
      %v1947 = vlaneseq
      %v1948 = vshrl.u32 %v1947, 7
      %v1949 = vsub.s32 %v1946, %v1948
      %v1950 = vrot.slane %v1928, %v1949
      %v1952 = vunpack.c.l.s4 1966171168
      %v1953 = vunpack.c.0.s8 %v1952
      %v1954 = vlaneseq
      %v1955 = vshrl.u32 %v1954, 7
      %v1956 = vsub.s32 %v1953, %v1955
      %v1957 = vrot.slane %v1929, %v1956
      %v1958 = vcombine.low %v1936, %v1943
      %v1959 = vcombine.low %v1950, %v1957
      %v1961 = vunpack.c.l.s4 1966171168
      %v1962 = vunpack.c.0.s8 %v1961
      %v1963 = vlaneseq
      %v1964 = vshrl.u32 %v1963, 7
      %v1965 = vsub.s32 %v1962, %v1964
      %v1966 = vrot.slane %v1958, %v1965
      %v1968 = vunpack.c.l.s4 1966171168
      %v1969 = vunpack.c.0.s8 %v1968
      %v1970 = vlaneseq
      %v1971 = vshrl.u32 %v1970, 7
      %v1972 = vsub.s32 %v1969, %v1971
      %v1973 = vrot.slane %v1959, %v1972
      %v1974 = vcombine.low %v1966, %v1973
      %v1976 = vmul.f32 %v1917, %v1974
      %v1977 = vadd.f32 %v1830, %v1976
      %1978 = vrot.lane.b32.xlu0 %v1528, 1
      %v1979 = vpop.permute.xlu0 %1978
      %1980 = vrot.lane.b32.xlu0 %v1529, 1
      %v1981 = vpop.permute.xlu0 %1980
      %1982 = vrot.lane.b32.xlu0 %v1530, 1
      %v1983 = vpop.permute.xlu0 %1982
      %1984 = vrot.lane.b32.xlu0 %v1531, 1
      %v1985 = vpop.permute.xlu0 %1984
      %1986 = vrot.lane.b32.xlu0 %v1532, 1
      %v1987 = vpop.permute.xlu0 %1986
      %1988 = vrot.lane.b32.xlu0 %v1533, 1
      %v1989 = vpop.permute.xlu0 %1988
      %1990 = vrot.lane.b32.xlu0 %v1534, 1
      %v1991 = vpop.permute.xlu0 %1990
      %1992 = vrot.lane.b32.xlu0 %v1535, 1
      %v1993 = vpop.permute.xlu0 %1992
      %v1994 = vsel %vm580, %v1991, %v1993
      %v1995 = vsel %vm580, %v1989, %v1991
      %v1996 = vsel %vm580, %v1987, %v1989
      %v1997 = vsel %vm580, %v1985, %v1987
      %v1998 = vsel %vm580, %v1983, %v1985
      %v1999 = vsel %vm580, %v1981, %v1983
      %v2000 = vsel %vm580, %v1979, %v1981
      %v2001 = vsel %vm580, %v1993, %v1979
      %2002 = vset.pattern.permute.xlu0 3
      %2003 = vperm.xlu0 %2002, %v228
      %v2004 = vpop.permute.xlu0 %2003
      %v2006 = vmul.f32 %v2001, %v2004
      %v2007 = vmul.f32 %v2000, %v2004
      %v2008 = vmul.f32 %v1999, %v2004
      %v2009 = vmul.f32 %v1998, %v2004
      %v2010 = vmul.f32 %v1997, %v2004
      %v2011 = vmul.f32 %v1996, %v2004
      %v2012 = vmul.f32 %v1995, %v2004
      %v2013 = vmul.f32 %v1994, %v2004
      %v2014 = vrot.slane %v2006, 4
      %v2015 = vadd.f32 %v2006, %v2014
      %v2016 = vrot.slane %v2015, 2
      %v2017 = vadd.f32 %v2015, %v2016
      %v2018 = vrot.slane %v2017, 1
      %v2019 = vadd.f32 %v2017, %v2018
      %v2020 = vrot.slane %v2007, 4
      %v2021 = vadd.f32 %v2007, %v2020
      %v2022 = vrot.slane %v2021, 2
      %v2023 = vadd.f32 %v2021, %v2022
      %v2024 = vrot.slane %v2023, 1
      %v2025 = vadd.f32 %v2023, %v2024
      %v2026 = vrot.slane %v2008, 4
      %v2027 = vadd.f32 %v2008, %v2026
      %v2028 = vrot.slane %v2027, 2
      %v2029 = vadd.f32 %v2027, %v2028
      %v2030 = vrot.slane %v2029, 1
      %v2031 = vadd.f32 %v2029, %v2030
      %v2032 = vrot.slane %v2009, 4
      %v2033 = vadd.f32 %v2009, %v2032
      %v2034 = vrot.slane %v2033, 2
      %v2035 = vadd.f32 %v2033, %v2034
      %v2036 = vrot.slane %v2035, 1
      %v2037 = vadd.f32 %v2035, %v2036
      %v2038 = vrot.slane %v2010, 4
      %v2039 = vadd.f32 %v2010, %v2038
      %v2040 = vrot.slane %v2039, 2
      %v2041 = vadd.f32 %v2039, %v2040
      %v2042 = vrot.slane %v2041, 1
      %v2043 = vadd.f32 %v2041, %v2042
      %v2044 = vrot.slane %v2011, 4
      %v2045 = vadd.f32 %v2011, %v2044
      %v2046 = vrot.slane %v2045, 2
      %v2047 = vadd.f32 %v2045, %v2046
      %v2048 = vrot.slane %v2047, 1
      %v2049 = vadd.f32 %v2047, %v2048
      %v2050 = vrot.slane %v2012, 4
      %v2051 = vadd.f32 %v2012, %v2050
      %v2052 = vrot.slane %v2051, 2
      %v2053 = vadd.f32 %v2051, %v2052
      %v2054 = vrot.slane %v2053, 1
      %v2055 = vadd.f32 %v2053, %v2054
      %v2056 = vrot.slane %v2013, 4
      %v2057 = vadd.f32 %v2013, %v2056
      %v2058 = vrot.slane %v2057, 2
      %v2059 = vadd.f32 %v2057, %v2058
      %v2060 = vrot.slane %v2059, 1
      %v2061 = vadd.f32 %v2059, %v2060
      %v2062 = vld [vmem:[%s589] ss:$8 sm:$0xf]
      %v2063 = vld [vmem:[%s589] ss:$8 sm:$0xf0]
      %v2064 = vor.u32 %v2062, %v2063
      %v2073 = vcombine.low %v2019, %v2025
      %v2074 = vcombine.low %v2031, %v2037
      %v2075 = vcombine.low %v2043, %v2049
      %v2076 = vcombine.low %v2055, %v2061
      %v2078 = vunpack.c.l.s4 1966171168
      %v2079 = vunpack.c.0.s8 %v2078
      %v2080 = vlaneseq
      %v2081 = vshrl.u32 %v2080, 7
      %v2082 = vsub.s32 %v2079, %v2081
      %v2083 = vrot.slane %v2073, %v2082
      %v2085 = vunpack.c.l.s4 1966171168
      %v2086 = vunpack.c.0.s8 %v2085
      %v2087 = vlaneseq
      %v2088 = vshrl.u32 %v2087, 7
      %v2089 = vsub.s32 %v2086, %v2088
      %v2090 = vrot.slane %v2074, %v2089
      %v2092 = vunpack.c.l.s4 1966171168
      %v2093 = vunpack.c.0.s8 %v2092
      %v2094 = vlaneseq
      %v2095 = vshrl.u32 %v2094, 7
      %v2096 = vsub.s32 %v2093, %v2095
      %v2097 = vrot.slane %v2075, %v2096
      %v2099 = vunpack.c.l.s4 1966171168
      %v2100 = vunpack.c.0.s8 %v2099
      %v2101 = vlaneseq
      %v2102 = vshrl.u32 %v2101, 7
      %v2103 = vsub.s32 %v2100, %v2102
      %v2104 = vrot.slane %v2076, %v2103
      %v2105 = vcombine.low %v2083, %v2090
      %v2106 = vcombine.low %v2097, %v2104
      %v2108 = vunpack.c.l.s4 1966171168
      %v2109 = vunpack.c.0.s8 %v2108
      %v2110 = vlaneseq
      %v2111 = vshrl.u32 %v2110, 7
      %v2112 = vsub.s32 %v2109, %v2111
      %v2113 = vrot.slane %v2105, %v2112
      %v2115 = vunpack.c.l.s4 1966171168
      %v2116 = vunpack.c.0.s8 %v2115
      %v2117 = vlaneseq
      %v2118 = vshrl.u32 %v2117, 7
      %v2119 = vsub.s32 %v2116, %v2118
      %v2120 = vrot.slane %v2106, %v2119
      %v2121 = vcombine.low %v2113, %v2120
      %v2123 = vmul.f32 %v2064, %v2121
      %v2124 = vadd.f32 %v1977, %v2123
      %2125 = vset.pattern.permute.xlu0 4
      %2126 = vperm.xlu0 %2125, %v228
      %v2127 = vpop.permute.xlu0 %2126
      %v2129 = vmul.f32 %v1528, %v2127
      %v2130 = vmul.f32 %v1529, %v2127
      %v2131 = vmul.f32 %v1530, %v2127
      %v2132 = vmul.f32 %v1531, %v2127
      %v2133 = vmul.f32 %v1532, %v2127
      %v2134 = vmul.f32 %v1533, %v2127
      %v2135 = vmul.f32 %v1534, %v2127
      %v2136 = vmul.f32 %v1535, %v2127
      %v2137 = vrot.slane %v2129, 4
      %v2138 = vadd.f32 %v2129, %v2137
      %v2139 = vrot.slane %v2138, 2
      %v2140 = vadd.f32 %v2138, %v2139
      %v2141 = vrot.slane %v2140, 1
      %v2142 = vadd.f32 %v2140, %v2141
      %v2143 = vrot.slane %v2130, 4
      %v2144 = vadd.f32 %v2130, %v2143
      %v2145 = vrot.slane %v2144, 2
      %v2146 = vadd.f32 %v2144, %v2145
      %v2147 = vrot.slane %v2146, 1
      %v2148 = vadd.f32 %v2146, %v2147
      %v2149 = vrot.slane %v2131, 4
      %v2150 = vadd.f32 %v2131, %v2149
      %v2151 = vrot.slane %v2150, 2
      %v2152 = vadd.f32 %v2150, %v2151
      %v2153 = vrot.slane %v2152, 1
      %v2154 = vadd.f32 %v2152, %v2153
      %v2155 = vrot.slane %v2132, 4
      %v2156 = vadd.f32 %v2132, %v2155
      %v2157 = vrot.slane %v2156, 2
      %v2158 = vadd.f32 %v2156, %v2157
      %v2159 = vrot.slane %v2158, 1
      %v2160 = vadd.f32 %v2158, %v2159
      %v2161 = vrot.slane %v2133, 4
      %v2162 = vadd.f32 %v2133, %v2161
      %v2163 = vrot.slane %v2162, 2
      %v2164 = vadd.f32 %v2162, %v2163
      %v2165 = vrot.slane %v2164, 1
      %v2166 = vadd.f32 %v2164, %v2165
      %v2167 = vrot.slane %v2134, 4
      %v2168 = vadd.f32 %v2134, %v2167
      %v2169 = vrot.slane %v2168, 2
      %v2170 = vadd.f32 %v2168, %v2169
      %v2171 = vrot.slane %v2170, 1
      %v2172 = vadd.f32 %v2170, %v2171
      %v2173 = vrot.slane %v2135, 4
      %v2174 = vadd.f32 %v2135, %v2173
      %v2175 = vrot.slane %v2174, 2
      %v2176 = vadd.f32 %v2174, %v2175
      %v2177 = vrot.slane %v2176, 1
      %v2178 = vadd.f32 %v2176, %v2177
      %v2179 = vrot.slane %v2136, 4
      %v2180 = vadd.f32 %v2136, %v2179
      %v2181 = vrot.slane %v2180, 2
      %v2182 = vadd.f32 %v2180, %v2181
      %v2183 = vrot.slane %v2182, 1
      %v2184 = vadd.f32 %v2182, %v2183
      %v2185 = vld [vmem:[%s674] ss:$8 sm:$0xf]
      %v2186 = vld [vmem:[%s674] ss:$8 sm:$0xf0]
      %v2187 = vor.u32 %v2185, %v2186
      %v2196 = vcombine.low %v2142, %v2148
      %v2197 = vcombine.low %v2154, %v2160
      %v2198 = vcombine.low %v2166, %v2172
      %v2199 = vcombine.low %v2178, %v2184
      %v2201 = vunpack.c.l.s4 1966171168
      %v2202 = vunpack.c.0.s8 %v2201
      %v2203 = vlaneseq
      %v2204 = vshrl.u32 %v2203, 7
      %v2205 = vsub.s32 %v2202, %v2204
      %v2206 = vrot.slane %v2196, %v2205
      %v2208 = vunpack.c.l.s4 1966171168
      %v2209 = vunpack.c.0.s8 %v2208
      %v2210 = vlaneseq
      %v2211 = vshrl.u32 %v2210, 7
      %v2212 = vsub.s32 %v2209, %v2211
      %v2213 = vrot.slane %v2197, %v2212
      %v2215 = vunpack.c.l.s4 1966171168
      %v2216 = vunpack.c.0.s8 %v2215
      %v2217 = vlaneseq
      %v2218 = vshrl.u32 %v2217, 7
      %v2219 = vsub.s32 %v2216, %v2218
      %v2220 = vrot.slane %v2198, %v2219
      %v2222 = vunpack.c.l.s4 1966171168
      %v2223 = vunpack.c.0.s8 %v2222
      %v2224 = vlaneseq
      %v2225 = vshrl.u32 %v2224, 7
      %v2226 = vsub.s32 %v2223, %v2225
      %v2227 = vrot.slane %v2199, %v2226
      %v2228 = vcombine.low %v2206, %v2213
      %v2229 = vcombine.low %v2220, %v2227
      %v2231 = vunpack.c.l.s4 1966171168
      %v2232 = vunpack.c.0.s8 %v2231
      %v2233 = vlaneseq
      %v2234 = vshrl.u32 %v2233, 7
      %v2235 = vsub.s32 %v2232, %v2234
      %v2236 = vrot.slane %v2228, %v2235
      %v2238 = vunpack.c.l.s4 1966171168
      %v2239 = vunpack.c.0.s8 %v2238
      %v2240 = vlaneseq
      %v2241 = vshrl.u32 %v2240, 7
      %v2242 = vsub.s32 %v2239, %v2241
      %v2243 = vrot.slane %v2229, %v2242
      %v2244 = vcombine.low %v2236, %v2243
      %v2246 = vmul.f32 %v2187, %v2244
      %v2247 = vadd.f32 %v2124, %v2246
      %2248 = vrot.lane.b32.xlu0 %v1528, 127
      %v2249 = vpop.permute.xlu0 %2248
      %2250 = vrot.lane.b32.xlu0 %v1529, 127
      %v2251 = vpop.permute.xlu0 %2250
      %2252 = vrot.lane.b32.xlu0 %v1530, 127
      %v2253 = vpop.permute.xlu0 %2252
      %2254 = vrot.lane.b32.xlu0 %v1531, 127
      %v2255 = vpop.permute.xlu0 %2254
      %2256 = vrot.lane.b32.xlu0 %v1532, 127
      %v2257 = vpop.permute.xlu0 %2256
      %2258 = vrot.lane.b32.xlu0 %v1533, 127
      %v2259 = vpop.permute.xlu0 %2258
      %2260 = vrot.lane.b32.xlu0 %v1534, 127
      %v2261 = vpop.permute.xlu0 %2260
      %2262 = vrot.lane.b32.xlu0 %v1535, 127
      %v2263 = vpop.permute.xlu0 %2262
      %v2264 = vsel %vm759, %v2261, %v2263
      %v2265 = vsel %vm759, %v2259, %v2261
      %v2266 = vsel %vm759, %v2257, %v2259
      %v2267 = vsel %vm759, %v2255, %v2257
      %v2268 = vsel %vm759, %v2253, %v2255
      %v2269 = vsel %vm759, %v2251, %v2253
      %v2270 = vsel %vm759, %v2249, %v2251
      %v2271 = vsel %vm759, %v2263, %v2249
      %2272 = vset.pattern.permute.xlu0 5
      %2273 = vperm.xlu0 %2272, %v228
      %v2274 = vpop.permute.xlu0 %2273
      %v2276 = vmul.f32 %v2270, %v2274
      %v2277 = vmul.f32 %v2269, %v2274
      %v2278 = vmul.f32 %v2268, %v2274
      %v2279 = vmul.f32 %v2267, %v2274
      %v2280 = vmul.f32 %v2266, %v2274
      %v2281 = vmul.f32 %v2265, %v2274
      %v2282 = vmul.f32 %v2264, %v2274
      %v2283 = vmul.f32 %v2271, %v2274
      %v2284 = vrot.slane %v2276, 4
      %v2285 = vadd.f32 %v2276, %v2284
      %v2286 = vrot.slane %v2285, 2
      %v2287 = vadd.f32 %v2285, %v2286
      %v2288 = vrot.slane %v2287, 1
      %v2289 = vadd.f32 %v2287, %v2288
      %v2290 = vrot.slane %v2277, 4
      %v2291 = vadd.f32 %v2277, %v2290
      %v2292 = vrot.slane %v2291, 2
      %v2293 = vadd.f32 %v2291, %v2292
      %v2294 = vrot.slane %v2293, 1
      %v2295 = vadd.f32 %v2293, %v2294
      %v2296 = vrot.slane %v2278, 4
      %v2297 = vadd.f32 %v2278, %v2296
      %v2298 = vrot.slane %v2297, 2
      %v2299 = vadd.f32 %v2297, %v2298
      %v2300 = vrot.slane %v2299, 1
      %v2301 = vadd.f32 %v2299, %v2300
      %v2302 = vrot.slane %v2279, 4
      %v2303 = vadd.f32 %v2279, %v2302
      %v2304 = vrot.slane %v2303, 2
      %v2305 = vadd.f32 %v2303, %v2304
      %v2306 = vrot.slane %v2305, 1
      %v2307 = vadd.f32 %v2305, %v2306
      %v2308 = vrot.slane %v2280, 4
      %v2309 = vadd.f32 %v2280, %v2308
      %v2310 = vrot.slane %v2309, 2
      %v2311 = vadd.f32 %v2309, %v2310
      %v2312 = vrot.slane %v2311, 1
      %v2313 = vadd.f32 %v2311, %v2312
      %v2314 = vrot.slane %v2281, 4
      %v2315 = vadd.f32 %v2281, %v2314
      %v2316 = vrot.slane %v2315, 2
      %v2317 = vadd.f32 %v2315, %v2316
      %v2318 = vrot.slane %v2317, 1
      %v2319 = vadd.f32 %v2317, %v2318
      %v2320 = vrot.slane %v2282, 4
      %v2321 = vadd.f32 %v2282, %v2320
      %v2322 = vrot.slane %v2321, 2
      %v2323 = vadd.f32 %v2321, %v2322
      %v2324 = vrot.slane %v2323, 1
      %v2325 = vadd.f32 %v2323, %v2324
      %v2326 = vrot.slane %v2283, 4
      %v2327 = vadd.f32 %v2283, %v2326
      %v2328 = vrot.slane %v2327, 2
      %v2329 = vadd.f32 %v2327, %v2328
      %v2330 = vrot.slane %v2329, 1
      %v2331 = vadd.f32 %v2329, %v2330
      %v2332 = vld [vmem:[%s768] ss:$8 sm:$0xf]
      %v2333 = vld [vmem:[%s768] ss:$8 sm:$0xf0]
      %v2334 = vor.u32 %v2332, %v2333
      %v2343 = vcombine.low %v2289, %v2295
      %v2344 = vcombine.low %v2301, %v2307
      %v2345 = vcombine.low %v2313, %v2319
      %v2346 = vcombine.low %v2325, %v2331
      %v2348 = vunpack.c.l.s4 1966171168
      %v2349 = vunpack.c.0.s8 %v2348
      %v2350 = vlaneseq
      %v2351 = vshrl.u32 %v2350, 7
      %v2352 = vsub.s32 %v2349, %v2351
      %v2353 = vrot.slane %v2343, %v2352
      %v2355 = vunpack.c.l.s4 1966171168
      %v2356 = vunpack.c.0.s8 %v2355
      %v2357 = vlaneseq
      %v2358 = vshrl.u32 %v2357, 7
      %v2359 = vsub.s32 %v2356, %v2358
      %v2360 = vrot.slane %v2344, %v2359
      %v2362 = vunpack.c.l.s4 1966171168
      %v2363 = vunpack.c.0.s8 %v2362
      %v2364 = vlaneseq
      %v2365 = vshrl.u32 %v2364, 7
      %v2366 = vsub.s32 %v2363, %v2365
      %v2367 = vrot.slane %v2345, %v2366
      %v2369 = vunpack.c.l.s4 1966171168
      %v2370 = vunpack.c.0.s8 %v2369
      %v2371 = vlaneseq
      %v2372 = vshrl.u32 %v2371, 7
      %v2373 = vsub.s32 %v2370, %v2372
      %v2374 = vrot.slane %v2346, %v2373
      %v2375 = vcombine.low %v2353, %v2360
      %v2376 = vcombine.low %v2367, %v2374
      %v2378 = vunpack.c.l.s4 1966171168
      %v2379 = vunpack.c.0.s8 %v2378
      %v2380 = vlaneseq
      %v2381 = vshrl.u32 %v2380, 7
      %v2382 = vsub.s32 %v2379, %v2381
      %v2383 = vrot.slane %v2375, %v2382
      %v2385 = vunpack.c.l.s4 1966171168
      %v2386 = vunpack.c.0.s8 %v2385
      %v2387 = vlaneseq
      %v2388 = vshrl.u32 %v2387, 7
      %v2389 = vsub.s32 %v2386, %v2388
      %v2390 = vrot.slane %v2376, %v2389
      %v2391 = vcombine.low %v2383, %v2390
      %v2393 = vmul.f32 %v2334, %v2391
      %v2394 = vadd.f32 %v2247, %v2393
      %2395 = vrot.lane.b32.xlu0 %v1528, 113
      %v2396 = vpop.permute.xlu0 %2395
      %2397 = vrot.lane.b32.xlu0 %v1529, 113
      %v2398 = vpop.permute.xlu0 %2397
      %2399 = vrot.lane.b32.xlu0 %v1530, 113
      %v2400 = vpop.permute.xlu0 %2399
      %2401 = vrot.lane.b32.xlu0 %v1531, 113
      %v2402 = vpop.permute.xlu0 %2401
      %2403 = vrot.lane.b32.xlu0 %v1532, 113
      %v2404 = vpop.permute.xlu0 %2403
      %2405 = vrot.lane.b32.xlu0 %v1533, 113
      %v2406 = vpop.permute.xlu0 %2405
      %2407 = vrot.lane.b32.xlu0 %v1534, 113
      %v2408 = vpop.permute.xlu0 %2407
      %2409 = vrot.lane.b32.xlu0 %v1535, 113
      %v2410 = vpop.permute.xlu0 %2409
      %v2411 = vsel %vm877, %v2408, %v2410
      %v2412 = vsel %vm877, %v2406, %v2408
      %v2413 = vsel %vm877, %v2404, %v2406
      %v2414 = vsel %vm877, %v2402, %v2404
      %v2415 = vsel %vm877, %v2400, %v2402
      %v2416 = vsel %vm877, %v2398, %v2400
      %v2417 = vsel %vm877, %v2396, %v2398
      %v2418 = vsel %vm877, %v2410, %v2396
      %2419 = vset.pattern.permute.xlu0 6
      %2420 = vperm.xlu0 %2419, %v228
      %v2421 = vpop.permute.xlu0 %2420
      %v2423 = vmul.f32 %v2417, %v2421
      %v2424 = vmul.f32 %v2416, %v2421
      %v2425 = vmul.f32 %v2415, %v2421
      %v2426 = vmul.f32 %v2414, %v2421
      %v2427 = vmul.f32 %v2413, %v2421
      %v2428 = vmul.f32 %v2412, %v2421
      %v2429 = vmul.f32 %v2411, %v2421
      %v2430 = vmul.f32 %v2418, %v2421
      %v2431 = vrot.slane %v2423, 4
      %v2432 = vadd.f32 %v2423, %v2431
      %v2433 = vrot.slane %v2432, 2
      %v2434 = vadd.f32 %v2432, %v2433
      %v2435 = vrot.slane %v2434, 1
      %v2436 = vadd.f32 %v2434, %v2435
      %v2437 = vrot.slane %v2424, 4
      %v2438 = vadd.f32 %v2424, %v2437
      %v2439 = vrot.slane %v2438, 2
      %v2440 = vadd.f32 %v2438, %v2439
      %v2441 = vrot.slane %v2440, 1
      %v2442 = vadd.f32 %v2440, %v2441
      %v2443 = vrot.slane %v2425, 4
      %v2444 = vadd.f32 %v2425, %v2443
      %v2445 = vrot.slane %v2444, 2
      %v2446 = vadd.f32 %v2444, %v2445
      %v2447 = vrot.slane %v2446, 1
      %v2448 = vadd.f32 %v2446, %v2447
      %v2449 = vrot.slane %v2426, 4
      %v2450 = vadd.f32 %v2426, %v2449
      %v2451 = vrot.slane %v2450, 2
      %v2452 = vadd.f32 %v2450, %v2451
      %v2453 = vrot.slane %v2452, 1
      %v2454 = vadd.f32 %v2452, %v2453
      %v2455 = vrot.slane %v2427, 4
      %v2456 = vadd.f32 %v2427, %v2455
      %v2457 = vrot.slane %v2456, 2
      %v2458 = vadd.f32 %v2456, %v2457
      %v2459 = vrot.slane %v2458, 1
      %v2460 = vadd.f32 %v2458, %v2459
      %v2461 = vrot.slane %v2428, 4
      %v2462 = vadd.f32 %v2428, %v2461
      %v2463 = vrot.slane %v2462, 2
      %v2464 = vadd.f32 %v2462, %v2463
      %v2465 = vrot.slane %v2464, 1
      %v2466 = vadd.f32 %v2464, %v2465
      %v2467 = vrot.slane %v2429, 4
      %v2468 = vadd.f32 %v2429, %v2467
      %v2469 = vrot.slane %v2468, 2
      %v2470 = vadd.f32 %v2468, %v2469
      %v2471 = vrot.slane %v2470, 1
      %v2472 = vadd.f32 %v2470, %v2471
      %v2473 = vrot.slane %v2430, 4
      %v2474 = vadd.f32 %v2430, %v2473
      %v2475 = vrot.slane %v2474, 2
      %v2476 = vadd.f32 %v2474, %v2475
      %v2477 = vrot.slane %v2476, 1
      %v2478 = vadd.f32 %v2476, %v2477
      %v2479 = vld [vmem:[%s886] ss:$8 sm:$0xf]
      %v2480 = vld [vmem:[%s886] ss:$8 sm:$0xf0]
      %v2481 = vor.u32 %v2479, %v2480
      %v2490 = vcombine.low %v2436, %v2442
      %v2491 = vcombine.low %v2448, %v2454
      %v2492 = vcombine.low %v2460, %v2466
      %v2493 = vcombine.low %v2472, %v2478
      %v2495 = vunpack.c.l.s4 1966171168
      %v2496 = vunpack.c.0.s8 %v2495
      %v2497 = vlaneseq
      %v2498 = vshrl.u32 %v2497, 7
      %v2499 = vsub.s32 %v2496, %v2498
      %v2500 = vrot.slane %v2490, %v2499
      %v2502 = vunpack.c.l.s4 1966171168
      %v2503 = vunpack.c.0.s8 %v2502
      %v2504 = vlaneseq
      %v2505 = vshrl.u32 %v2504, 7
      %v2506 = vsub.s32 %v2503, %v2505
      %v2507 = vrot.slane %v2491, %v2506
      %v2509 = vunpack.c.l.s4 1966171168
      %v2510 = vunpack.c.0.s8 %v2509
      %v2511 = vlaneseq
      %v2512 = vshrl.u32 %v2511, 7
      %v2513 = vsub.s32 %v2510, %v2512
      %v2514 = vrot.slane %v2492, %v2513
      %v2516 = vunpack.c.l.s4 1966171168
      %v2517 = vunpack.c.0.s8 %v2516
      %v2518 = vlaneseq
      %v2519 = vshrl.u32 %v2518, 7
      %v2520 = vsub.s32 %v2517, %v2519
      %v2521 = vrot.slane %v2493, %v2520
      %v2522 = vcombine.low %v2500, %v2507
      %v2523 = vcombine.low %v2514, %v2521
      %v2525 = vunpack.c.l.s4 1966171168
      %v2526 = vunpack.c.0.s8 %v2525
      %v2527 = vlaneseq
      %v2528 = vshrl.u32 %v2527, 7
      %v2529 = vsub.s32 %v2526, %v2528
      %v2530 = vrot.slane %v2522, %v2529
      %v2532 = vunpack.c.l.s4 1966171168
      %v2533 = vunpack.c.0.s8 %v2532
      %v2534 = vlaneseq
      %v2535 = vshrl.u32 %v2534, 7
      %v2536 = vsub.s32 %v2533, %v2535
      %v2537 = vrot.slane %v2523, %v2536
      %v2538 = vcombine.low %v2530, %v2537
      %v2540 = vmul.f32 %v2481, %v2538
      %v2541 = vadd.f32 %v2394, %v2540
      %2542 = vrot.lane.b32.xlu0 %v1528, 112
      %v2543 = vpop.permute.xlu0 %2542
      %2544 = vrot.lane.b32.xlu0 %v1529, 112
      %v2545 = vpop.permute.xlu0 %2544
      %2546 = vrot.lane.b32.xlu0 %v1530, 112
      %v2547 = vpop.permute.xlu0 %2546
      %2548 = vrot.lane.b32.xlu0 %v1531, 112
      %v2549 = vpop.permute.xlu0 %2548
      %2550 = vrot.lane.b32.xlu0 %v1532, 112
      %v2551 = vpop.permute.xlu0 %2550
      %2552 = vrot.lane.b32.xlu0 %v1533, 112
      %v2553 = vpop.permute.xlu0 %2552
      %2554 = vrot.lane.b32.xlu0 %v1534, 112
      %v2555 = vpop.permute.xlu0 %2554
      %2556 = vrot.lane.b32.xlu0 %v1535, 112
      %v2557 = vpop.permute.xlu0 %2556
      %v2558 = vsel %vm987, %v2555, %v2557
      %v2559 = vsel %vm987, %v2553, %v2555
      %v2560 = vsel %vm987, %v2551, %v2553
      %v2561 = vsel %vm987, %v2549, %v2551
      %v2562 = vsel %vm987, %v2547, %v2549
      %v2563 = vsel %vm987, %v2545, %v2547
      %v2564 = vsel %vm987, %v2543, %v2545
      %v2565 = vsel %vm987, %v2557, %v2543
      %2566 = vset.pattern.permute.xlu0 7
      %2567 = vperm.xlu0 %2566, %v228
      %v2568 = vpop.permute.xlu0 %2567
      %v2570 = vmul.f32 %v2564, %v2568
      %v2571 = vmul.f32 %v2563, %v2568
      %v2572 = vmul.f32 %v2562, %v2568
      %v2573 = vmul.f32 %v2561, %v2568
      %v2574 = vmul.f32 %v2560, %v2568
      %v2575 = vmul.f32 %v2559, %v2568
      %v2576 = vmul.f32 %v2558, %v2568
      %v2577 = vmul.f32 %v2565, %v2568
      %v2578 = vrot.slane %v2570, 4
      %v2579 = vadd.f32 %v2570, %v2578
      %v2580 = vrot.slane %v2579, 2
      %v2581 = vadd.f32 %v2579, %v2580
      %v2582 = vrot.slane %v2581, 1
      %v2583 = vadd.f32 %v2581, %v2582
      %v2584 = vrot.slane %v2571, 4
      %v2585 = vadd.f32 %v2571, %v2584
      %v2586 = vrot.slane %v2585, 2
      %v2587 = vadd.f32 %v2585, %v2586
      %v2588 = vrot.slane %v2587, 1
      %v2589 = vadd.f32 %v2587, %v2588
      %v2590 = vrot.slane %v2572, 4
      %v2591 = vadd.f32 %v2572, %v2590
      %v2592 = vrot.slane %v2591, 2
      %v2593 = vadd.f32 %v2591, %v2592
      %v2594 = vrot.slane %v2593, 1
      %v2595 = vadd.f32 %v2593, %v2594
      %v2596 = vrot.slane %v2573, 4
      %v2597 = vadd.f32 %v2573, %v2596
      %v2598 = vrot.slane %v2597, 2
      %v2599 = vadd.f32 %v2597, %v2598
      %v2600 = vrot.slane %v2599, 1
      %v2601 = vadd.f32 %v2599, %v2600
      %v2602 = vrot.slane %v2574, 4
      %v2603 = vadd.f32 %v2574, %v2602
      %v2604 = vrot.slane %v2603, 2
      %v2605 = vadd.f32 %v2603, %v2604
      %v2606 = vrot.slane %v2605, 1
      %v2607 = vadd.f32 %v2605, %v2606
      %v2608 = vrot.slane %v2575, 4
      %v2609 = vadd.f32 %v2575, %v2608
      %v2610 = vrot.slane %v2609, 2
      %v2611 = vadd.f32 %v2609, %v2610
      %v2612 = vrot.slane %v2611, 1
      %v2613 = vadd.f32 %v2611, %v2612
      %v2614 = vrot.slane %v2576, 4
      %v2615 = vadd.f32 %v2576, %v2614
      %v2616 = vrot.slane %v2615, 2
      %v2617 = vadd.f32 %v2615, %v2616
      %v2618 = vrot.slane %v2617, 1
      %v2619 = vadd.f32 %v2617, %v2618
      %v2620 = vrot.slane %v2577, 4
      %v2621 = vadd.f32 %v2577, %v2620
      %v2622 = vrot.slane %v2621, 2
      %v2623 = vadd.f32 %v2621, %v2622
      %v2624 = vrot.slane %v2623, 1
      %v2625 = vadd.f32 %v2623, %v2624
      %v2626 = vld [vmem:[%s996] ss:$8 sm:$0xf]
      %v2627 = vld [vmem:[%s996] ss:$8 sm:$0xf0]
      %v2628 = vor.u32 %v2626, %v2627
      %v2637 = vcombine.low %v2583, %v2589
      %v2638 = vcombine.low %v2595, %v2601
      %v2639 = vcombine.low %v2607, %v2613
      %v2640 = vcombine.low %v2619, %v2625
      %v2642 = vunpack.c.l.s4 1966171168
      %v2643 = vunpack.c.0.s8 %v2642
      %v2644 = vlaneseq
      %v2645 = vshrl.u32 %v2644, 7
      %v2646 = vsub.s32 %v2643, %v2645
      %v2647 = vrot.slane %v2637, %v2646
      %v2649 = vunpack.c.l.s4 1966171168
      %v2650 = vunpack.c.0.s8 %v2649
      %v2651 = vlaneseq
      %v2652 = vshrl.u32 %v2651, 7
      %v2653 = vsub.s32 %v2650, %v2652
      %v2654 = vrot.slane %v2638, %v2653
      %v2656 = vunpack.c.l.s4 1966171168
      %v2657 = vunpack.c.0.s8 %v2656
      %v2658 = vlaneseq
      %v2659 = vshrl.u32 %v2658, 7
      %v2660 = vsub.s32 %v2657, %v2659
      %v2661 = vrot.slane %v2639, %v2660
      %v2663 = vunpack.c.l.s4 1966171168
      %v2664 = vunpack.c.0.s8 %v2663
      %v2665 = vlaneseq
      %v2666 = vshrl.u32 %v2665, 7
      %v2667 = vsub.s32 %v2664, %v2666
      %v2668 = vrot.slane %v2640, %v2667
      %v2669 = vcombine.low %v2647, %v2654
      %v2670 = vcombine.low %v2661, %v2668
      %v2672 = vunpack.c.l.s4 1966171168
      %v2673 = vunpack.c.0.s8 %v2672
      %v2674 = vlaneseq
      %v2675 = vshrl.u32 %v2674, 7
      %v2676 = vsub.s32 %v2673, %v2675
      %v2677 = vrot.slane %v2669, %v2676
      %v2679 = vunpack.c.l.s4 1966171168
      %v2680 = vunpack.c.0.s8 %v2679
      %v2681 = vlaneseq
      %v2682 = vshrl.u32 %v2681, 7
      %v2683 = vsub.s32 %v2680, %v2682
      %v2684 = vrot.slane %v2670, %v2683
      %v2685 = vcombine.low %v2677, %v2684
      %v2687 = vmul.f32 %v2628, %v2685
      %v2688 = vadd.f32 %v2541, %v2687
      %2689 = vrot.lane.b32.xlu0 %v1528, 111
      %v2690 = vpop.permute.xlu0 %2689
      %2691 = vrot.lane.b32.xlu0 %v1529, 111
      %v2692 = vpop.permute.xlu0 %2691
      %2693 = vrot.lane.b32.xlu0 %v1530, 111
      %v2694 = vpop.permute.xlu0 %2693
      %2695 = vrot.lane.b32.xlu0 %v1531, 111
      %v2696 = vpop.permute.xlu0 %2695
      %2697 = vrot.lane.b32.xlu0 %v1532, 111
      %v2698 = vpop.permute.xlu0 %2697
      %2699 = vrot.lane.b32.xlu0 %v1533, 111
      %v2700 = vpop.permute.xlu0 %2699
      %2701 = vrot.lane.b32.xlu0 %v1534, 111
      %v2702 = vpop.permute.xlu0 %2701
      %2703 = vrot.lane.b32.xlu0 %v1535, 111
      %v2704 = vpop.permute.xlu0 %2703
      %v2705 = vsel %vm1097, %v2702, %v2704
      %v2706 = vsel %vm1097, %v2700, %v2702
      %v2707 = vsel %vm1097, %v2698, %v2700
      %v2708 = vsel %vm1097, %v2696, %v2698
      %v2709 = vsel %vm1097, %v2694, %v2696
      %v2710 = vsel %vm1097, %v2692, %v2694
      %v2711 = vsel %vm1097, %v2690, %v2692
      %v2712 = vsel %vm1097, %v2704, %v2690
      %2713 = vset.pattern.permute.xlu0 8
      %2714 = vperm.xlu0 %2713, %v228
      %v2715 = vpop.permute.xlu0 %2714
      %v2717 = vmul.f32 %v2711, %v2715
      %v2718 = vmul.f32 %v2710, %v2715
      %v2719 = vmul.f32 %v2709, %v2715
      %v2720 = vmul.f32 %v2708, %v2715
      %v2721 = vmul.f32 %v2707, %v2715
      %v2722 = vmul.f32 %v2706, %v2715
      %v2723 = vmul.f32 %v2705, %v2715
      %v2724 = vmul.f32 %v2712, %v2715
      %v2725 = vrot.slane %v2717, 4
      %v2726 = vadd.f32 %v2717, %v2725
      %v2727 = vrot.slane %v2726, 2
      %v2728 = vadd.f32 %v2726, %v2727
      %v2729 = vrot.slane %v2728, 1
      %v2730 = vadd.f32 %v2728, %v2729
      %v2731 = vrot.slane %v2718, 4
      %v2732 = vadd.f32 %v2718, %v2731
      %v2733 = vrot.slane %v2732, 2
      %v2734 = vadd.f32 %v2732, %v2733
      %v2735 = vrot.slane %v2734, 1
      %v2736 = vadd.f32 %v2734, %v2735
      %v2737 = vrot.slane %v2719, 4
      %v2738 = vadd.f32 %v2719, %v2737
      %v2739 = vrot.slane %v2738, 2
      %v2740 = vadd.f32 %v2738, %v2739
      %v2741 = vrot.slane %v2740, 1
      %v2742 = vadd.f32 %v2740, %v2741
      %v2743 = vrot.slane %v2720, 4
      %v2744 = vadd.f32 %v2720, %v2743
      %v2745 = vrot.slane %v2744, 2
      %v2746 = vadd.f32 %v2744, %v2745
      %v2747 = vrot.slane %v2746, 1
      %v2748 = vadd.f32 %v2746, %v2747
      %v2749 = vrot.slane %v2721, 4
      %v2750 = vadd.f32 %v2721, %v2749
      %v2751 = vrot.slane %v2750, 2
      %v2752 = vadd.f32 %v2750, %v2751
      %v2753 = vrot.slane %v2752, 1
      %v2754 = vadd.f32 %v2752, %v2753
      %v2755 = vrot.slane %v2722, 4
      %v2756 = vadd.f32 %v2722, %v2755
      %v2757 = vrot.slane %v2756, 2
      %v2758 = vadd.f32 %v2756, %v2757
      %v2759 = vrot.slane %v2758, 1
      %v2760 = vadd.f32 %v2758, %v2759
      %v2761 = vrot.slane %v2723, 4
      %v2762 = vadd.f32 %v2723, %v2761
      %v2763 = vrot.slane %v2762, 2
      %v2764 = vadd.f32 %v2762, %v2763
      %v2765 = vrot.slane %v2764, 1
      %v2766 = vadd.f32 %v2764, %v2765
      %v2767 = vrot.slane %v2724, 4
      %v2768 = vadd.f32 %v2724, %v2767
      %v2769 = vrot.slane %v2768, 2
      %v2770 = vadd.f32 %v2768, %v2769
      %v2771 = vrot.slane %v2770, 1
      %v2772 = vadd.f32 %v2770, %v2771
      %v2773 = vld [vmem:[%s1106] ss:$8 sm:$0xf]
      %v2774 = vld [vmem:[%s1106] ss:$8 sm:$0xf0]
      %v2775 = vor.u32 %v2773, %v2774
      %v2784 = vcombine.low %v2730, %v2736
      %v2785 = vcombine.low %v2742, %v2748
      %v2786 = vcombine.low %v2754, %v2760
      %v2787 = vcombine.low %v2766, %v2772
      %v2789 = vunpack.c.l.s4 1966171168
      %v2790 = vunpack.c.0.s8 %v2789
      %v2791 = vlaneseq
      %v2792 = vshrl.u32 %v2791, 7
      %v2793 = vsub.s32 %v2790, %v2792
      %v2794 = vrot.slane %v2784, %v2793
      %v2796 = vunpack.c.l.s4 1966171168
      %v2797 = vunpack.c.0.s8 %v2796
      %v2798 = vlaneseq
      %v2799 = vshrl.u32 %v2798, 7
      %v2800 = vsub.s32 %v2797, %v2799
      %v2801 = vrot.slane %v2785, %v2800
      %v2803 = vunpack.c.l.s4 1966171168
      %v2804 = vunpack.c.0.s8 %v2803
      %v2805 = vlaneseq
      %v2806 = vshrl.u32 %v2805, 7
      %v2807 = vsub.s32 %v2804, %v2806
      %v2808 = vrot.slane %v2786, %v2807
      %v2810 = vunpack.c.l.s4 1966171168
      %v2811 = vunpack.c.0.s8 %v2810
      %v2812 = vlaneseq
      %v2813 = vshrl.u32 %v2812, 7
      %v2814 = vsub.s32 %v2811, %v2813
      %v2815 = vrot.slane %v2787, %v2814
      %v2816 = vcombine.low %v2794, %v2801
      %v2817 = vcombine.low %v2808, %v2815
      %v2819 = vunpack.c.l.s4 1966171168
      %v2820 = vunpack.c.0.s8 %v2819
      %v2821 = vlaneseq
      %v2822 = vshrl.u32 %v2821, 7
      %v2823 = vsub.s32 %v2820, %v2822
      %v2824 = vrot.slane %v2816, %v2823
      %v2826 = vunpack.c.l.s4 1966171168
      %v2827 = vunpack.c.0.s8 %v2826
      %v2828 = vlaneseq
      %v2829 = vshrl.u32 %v2828, 7
      %v2830 = vsub.s32 %v2827, %v2829
      %v2831 = vrot.slane %v2817, %v2830
      %v2832 = vcombine.low %v2824, %v2831
      %v2834 = vmul.f32 %v2775, %v2832
      %v2835 = vadd.f32 %v2688, %v2834
      %v2836 = vstv %s229
      %v2837 = vadd.f32 %v2835, %v2836
      %v2838 = vxor.u32 %v2837, 2147483648
      %v2839 = vmul.f32 %v2838, 1.442695
      %v2840 = vpow.pop %v2839
      %v2841 = vadd.f32 %v2840, 1.0
      %v2842 = vrcp.pop %v2841
      %v2843 = vmul.f32 1.0, %v2842
      %2844 = vst [vmem:[%s225] sm:$0xff] %v2843
      %s2845 = smul.u32 8, %s17
      %p2846 = scmp.lt.s32.totalorder %s2845, 15
      %s2847 = scalar_select %p2846, %s2845, 15
      %s2848 = scalar_lea.vmem %s5, %s2847
      // Predicated region
      $region41: #{simple_diff_cnn.1} parent=39 // pred_check
        %p2849 = pneg %p145
      $region42: #{simple_diff_cnn.1} parent=39 // pred_check_branch
        %2851 = sbr.rel (%p2849) target = $region44
      $region43: #{simple_diff_cnn.1} parent=39 // pred_region
        %s2852 = smul.u32 8, %s17
      $region44: #{simple_diff_cnn.1} parent=39 // pred_fallthru
        _
    $region40: #{simple_diff_cnn.1} parent=5 // pred_fallthru
      _
    %p2853 = scmp.le.s32.totalorder 2, %s12
    // Predicated region
    $region45: #{simple_diff_cnn.1} parent=5 // pred_check
      %p2854 = pneg %p2853
    $region46: #{simple_diff_cnn.1} parent=5 // pred_check_branch
      %2856 = sbr.rel (%p2854) target = $region48
    $region47: #{simple_diff_cnn.1} parent=5 // pred_region
      %s2857 = ssub.s32 %s12, 2
      // Predicated region
      $region49: #{simple_diff_cnn.1} parent=47 // pred_check
        %p2858 = pneg %p151
      $region50: #{simple_diff_cnn.1} parent=47 // pred_check_branch
        %2860 = sbr.rel (%p2858) target = $region52
      $region51: #{simple_diff_cnn.1} parent=47 // pred_region
        %s2861 = smul.u32 8, %s18
        %p2862 = scmp.lt.s32.totalorder %s2861, 15
        %s2863 = scalar_select %p2862, %s2861, 15
        %s2864 = scalar_lea.vmem %s5, %s2863
      $region52: #{simple_diff_cnn.1} parent=47 // pred_fallthru
        _
    $region48: #{simple_diff_cnn.1} parent=5 // pred_fallthru
      _
  $region6: #{simple_diff_cnn.1} parent=0 // loop_footer
    %s16 = sadd.s32 1, %s12
  $region7: #{simple_diff_cnn.1} parent=0 // loop_footer_branch
    %11 = sbr.rel target = $region3
  $region8: #{simple_diff_cnn.1} parent=0 // loop_exit
    _

</llo_original>
